<compile_context>
chip_gen: v7x
topology: tpu7x:2x2x1
jax: 0.10.0
libtpu: 0.0.40
codegen_flags: <defaults>
</compile_context>

<pallas_src>
import functools

import jax
import jax.numpy as jnp
from jax.experimental import pallas as pl
from jax.experimental.pallas import tpu as pltpu


def attention_kernel(h_ref, v_ref, wdec_t_ref, wenc_t_ref, wfull_ref, out_ref,
                     *, bf16_elementwise: bool):
    """One batch tile of additive attention.

    h_ref:      (TB, dec_dim)        decoder hidden state tile
    v_ref:      (TB, L, enc_dim)     encoder features tile (dominant HBM stream)
    wdec_t_ref: (dec_dim, attn_dim)  dec_attn.weight, pre-transposed
    wenc_t_ref: (enc_dim, attn_dim)  enc_attn.weight, pre-transposed
    wfull_ref:  (1, attn_dim)        full_attn.weight (kept f32)
    out_ref:    (TB, enc_dim)        context
    """
    # TODO(synk): for very large L, chunk the sequence axis in-kernel with a
    # two-pass / online softmax so VMEM scales with TB*L_chunk instead of TB*L.
    tb, l, enc_dim = v_ref.shape

    h = h_ref[...]
    v = v_ref[...]

    # attn_1 = dec_attn(h): (TB, attn_dim), f32 accumulation on the MXU.
    attn_1 = jnp.dot(h, wdec_t_ref[...], preferred_element_type=jnp.float32)

    # attn_2 = enc_attn(V), fused across the whole batch tile as a single
    # (TB*L, enc_dim) @ (enc_dim, attn_dim) MXU matmul.  Any dtype cast for
    # the MXU happens per-tile in VMEM -- V never round-trips HBM for it.
    v_mm = v.reshape(tb * l, enc_dim).astype(wenc_t_ref.dtype)
    attn_2 = jnp.dot(v_mm, wenc_t_ref[...],
                     preferred_element_type=jnp.float32).reshape(tb, l, -1)

    # Additive attention energies.  tanh is the largest transcendental volume;
    # run it in bf16 only on chips whose EUP/VPU have a bf16 path (v6e/v7x).
    energy = attn_1[:, None, :] + attn_2                     # (TB, L, attn) f32
    if bf16_elementwise:
        t = jnp.tanh(energy.astype(jnp.bfloat16))
    else:
        t = jnp.tanh(energy)

    # full_attn projection (output width 1): VPU multiply + lane reduce
    # (an N=1 MXU matmul would waste 127/128 columns); accumulate in f32.
    scores = jnp.sum(t * wfull_ref[...], axis=-1)            # (TB, L) f32

    # Softmax over the sequence axis (L on lanes); EUP exp + approx reciprocal.
    m = jnp.max(scores, axis=-1, keepdims=True)
    e = jnp.exp(scores - m)
    denom = jnp.sum(e, axis=-1, keepdims=True)
    alpha = e * pl.reciprocal(denom, approx=True)            # (TB, L)

    # context = sum_L alpha * V -> (TB, enc_dim).  The f32 promotion of V is
    # fused into the multiply (no explicit full-tile f32 copy of V).
    context = jnp.sum(alpha[:, :, None] * v, axis=1)
    out_ref[...] = context.astype(out_ref.dtype)


def _round_up(x: int, m: int) -> int:
    return (x + m - 1) // m * m


def _default_bf16_elementwise() -> bool:
    """bf16 tanh only on chips whose VPU/EUP have a bf16 path (v6e / v7x)."""
    try:
        kind = jax.devices()[0].device_kind.lower()
    except Exception:
        return False
    return not any(tag in kind for tag in ("v2", "v3", "v4", "v5"))


def _pick_block_b(batch: int, seq: int, enc_dim: int, attn_dim: int,
                  v_itemsize: int) -> int:
    """Largest multiple-of-8 batch tile fitting a conservative VMEM budget
    (12 MiB: under every chip's scoped default, incl. v5e's 16 MiB), capped so
    the grid keeps >= 2 steps for megacore sharding whenever the batch allows."""
    budget = 12 * 1024 * 1024
    per_row = (2 * seq * enc_dim * v_itemsize        # double-buffered V block
               + 3 * seq * attn_dim * 4              # attn_2 / tanh temp / score temp (f32)
               + seq * enc_dim * 4)                  # alpha*V product (f32)
    tb = max(8, budget // max(per_row, 1))
    tb = min(tb, 512)
    if batch > 8:
        tb = min(tb, _round_up(pl.cdiv(batch, 2), 8))
    return max(8, (tb // 8) * 8)


@functools.partial(
    jax.jit, static_argnames=("block_b", "bf16_matmul", "bf16_elementwise"))
def attention_pallas(h, V, w_dec, w_enc, w_full, *, block_b=None,
                     bf16_matmul=True, bf16_elementwise=None):
    """context = (softmax(full_attn(tanh(dec_attn(h)[:,None] + enc_attn(V)))) * V).sum(1)."""
    B, dec_dim = h.shape
    _, L, enc_dim = V.shape
    attn_dim = w_dec.shape[0]
    out_dtype = V.dtype

    if bf16_elementwise is None:
        bf16_elementwise = _default_bf16_elementwise()

    # Pre-transpose the grid-invariant weights ONCE, outside the kernel.
    w_dec_t = w_dec.T                                  # (dec_dim, attn_dim)
    w_enc_t = w_enc.T                                  # (enc_dim, attn_dim)
    w_full2 = w_full.reshape(1, attn_dim)              # stays f32 (VPU reduce)

    h_in = h
    if bf16_matmul:
        # Cast only the tiny operands (weights, h) in the wrapper.  V is NOT
        # cast here: that would add a full HBM round-trip of the dominant
        # stream.  It streams in its producer dtype (give the producer bf16 V
        # for the 2x bandwidth win); MXU casts happen per-tile in VMEM.
        w_dec_t = w_dec_t.astype(jnp.bfloat16)
        w_enc_t = w_enc_t.astype(jnp.bfloat16)
        h_in = h.astype(jnp.bfloat16)

    # Batch tile: as large as the VMEM budget allows (HBM-bound on V; big
    # tiles amortize per-step overhead), multiple of 8 sublanes.
    tb = block_b if block_b is not None else _pick_block_b(
        B, L, enc_dim, attn_dim, V.dtype.itemsize)
    if tb >= B:
        tb = B                       # single full-batch block (always legal)
    else:
        tb = max(8, (tb // 8) * 8)   # ragged last tile handled by Pallas masking
    grid = (pl.cdiv(B, tb),)

    # Scoped-VMEM request from an explicit per-step estimate so large explicit
    # tiles are not rejected by the 16/32 MiB scoped defaults.
    w_bytes = 2 if bf16_matmul else 4
    out_bytes = jnp.dtype(out_dtype).itemsize
    vmem_est = (2 * tb * L * enc_dim * V.dtype.itemsize        # V blocks (dbl-buffered)
                + 2 * tb * dec_dim * h_in.dtype.itemsize       # h blocks
                + 2 * tb * enc_dim * out_bytes                 # out blocks
                + 2 * (dec_dim + enc_dim) * attn_dim * w_bytes # weight blocks
                + 2 * attn_dim * 4                             # w_full block
                + tb * L * (3 * attn_dim + enc_dim) * 4)       # f32 intermediates
    vmem_limit = int(min(max(2 * vmem_est, 32 * 1024 * 1024),
                         100 * 1024 * 1024))

    kernel = functools.partial(attention_kernel,
                               bf16_elementwise=bool(bf16_elementwise))

    return pl.pallas_call(
        kernel,
        out_shape=jax.ShapeDtypeStruct((B, enc_dim), out_dtype),
        grid_spec=pltpu.PrefetchScalarGridSpec(
            num_scalar_prefetch=0,
            grid=grid,
            in_specs=[
                pl.BlockSpec((tb, dec_dim), lambda b: (b, 0)),
                pl.BlockSpec((tb, L, enc_dim), lambda b: (b, 0, 0)),
                pl.BlockSpec((dec_dim, attn_dim), lambda b: (0, 0)),
                pl.BlockSpec((enc_dim, attn_dim), lambda b: (0, 0)),
                pl.BlockSpec((1, attn_dim), lambda b: (0, 0)),
            ],
            out_specs=pl.BlockSpec((tb, enc_dim), lambda b: (b, 0)),
        ),
        compiler_params=pltpu.CompilerParams(
            dimension_semantics=("parallel",),
            vmem_limit_bytes=vmem_limit),
    )(h_in, V, w_dec_t, w_enc_t, w_full2)


def attention_ref(h, V, w_dec, w_enc, w_full):
    """Pure-JAX reference matching the PyTorch module exactly (bias=False)."""
    attn_1 = h @ w_dec.T                                     # (B, attn_dim)
    attn_2 = V @ w_enc.T                                     # (B, L, attn_dim)
    attn = jnp.tanh(attn_1[:, None, :] + attn_2) @ w_full.T  # (B, L, 1)
    attn = attn[..., 0]                                      # (B, L)
    alpha = jax.nn.softmax(attn, axis=-1)                    # (B, L)
    return jnp.sum(alpha[..., None] * V, axis=1)             # (B, enc_dim)


if __name__ == "__main__":
    # Small, TPU-friendly shapes consistent with the module's forward pass.
    B = 16            # batch
    L = 64            # w * h of the encoder feature map (e.g. 8 x 8)
    enc_dim = 128
    dec_dim = 128
    attn_dim = 128

    key = jax.random.PRNGKey(0)
    k_h, k_v, k_wd, k_we, k_wf = jax.random.split(key, 5)

    h = jax.random.normal(k_h, (B, dec_dim), dtype=jnp.float32)
    V = jax.random.normal(k_v, (B, L, enc_dim), dtype=jnp.float32)

    # Deterministic synthetic weights (PyTorch nn.Linear weight shape: (out, in)).
    w_dec = jax.random.normal(k_wd, (attn_dim, dec_dim), dtype=jnp.float32) * 0.05
    w_enc = jax.random.normal(k_we, (attn_dim, enc_dim), dtype=jnp.float32) * 0.05
    w_full = jax.random.normal(k_wf, (1, attn_dim), dtype=jnp.float32) * 0.05

    ref = attention_ref(h, V, w_dec, w_enc, w_full)

    # Exact-precision path (f32 everywhere; approx softmax reciprocal -> 1e-3 tol).
    out_f32 = attention_pallas(h, V, w_dec, w_enc, w_full,
                               bf16_matmul=False, bf16_elementwise=False)
    out_f32 = jax.block_until_ready(out_f32)
    assert out_f32.shape == (B, enc_dim)
    assert jnp.allclose(out_f32, ref, atol=1e-3, rtol=1e-3), "f32 kernel mismatch"

    # Default fast path: bf16 matmul operands (f32 MXU accumulation), bf16
    # tanh on chips that support it.  Accuracy contract is the bf16 delta.
    out_fast = attention_pallas(h, V, w_dec, w_enc, w_full)
    out_fast = jax.block_until_ready(out_fast)
    assert out_fast.shape == (B, enc_dim)
    assert jnp.allclose(out_fast, ref, atol=3e-2, rtol=3e-2), "fast kernel mismatch"

    print("KERNEL_OK")
</pallas_src>

<mosaic_0001>
module attributes {stable_mosaic.version = 11 : i64} {
  func.func @attention_kernel(%arg0: i32, %arg1: memref<8x128xf32, #tpu.memory_space<vmem>>, %arg2: memref<8x64x128xf32, #tpu.memory_space<vmem>>, %arg3: memref<128x128xf32, #tpu.memory_space<vmem>>, %arg4: memref<128x128xf32, #tpu.memory_space<vmem>>, %arg5: memref<1x128xf32, #tpu.memory_space<vmem>>, %arg6: memref<8x128xf32, #tpu.memory_space<vmem>>) attributes {dimension_semantics = [#tpu.dimension_semantics<parallel>], iteration_bounds = array<i64: 2>, scalar_prefetch = 0 : i64, scratch_operands = 0 : i64, tpu.core_type = #tpu.core_type<tc>, window_params = [{transform_indices = @transform_0, window_bounds = array<i64: 8, 128>}, {transform_indices = @transform_1, window_bounds = array<i64: 8, 64, 128>}, {pipeline_mode = #tpu.pipeline_mode<synchronous>, transform_indices = @transform_2, window_bounds = array<i64: 128, 128>}, {pipeline_mode = #tpu.pipeline_mode<synchronous>, transform_indices = @transform_3, window_bounds = array<i64: 128, 128>}, {pipeline_mode = #tpu.pipeline_mode<synchronous>, transform_indices = @transform_4, window_bounds = array<i64: 1, 128>}, {transform_indices = @transform_5, window_bounds = array<i64: 8, 128>}]} {
    %c0 = arith.constant 0 : index
    %c0_0 = arith.constant 0 : index
    %0 = vector.load %arg1[%c0, %c0_0] : memref<8x128xf32, #tpu.memory_space<vmem>>, vector<8x128xf32>
    %c0_1 = arith.constant 0 : index
    %c0_2 = arith.constant 0 : index
    %c0_3 = arith.constant 0 : index
    %1 = vector.load %arg2[%c0_1, %c0_2, %c0_3] : memref<8x64x128xf32, #tpu.memory_space<vmem>>, vector<8x64x128xf32>
    %c0_4 = arith.constant 0 : index
    %c0_5 = arith.constant 0 : index
    %2 = vector.load %arg3[%c0_4, %c0_5] : memref<128x128xf32, #tpu.memory_space<vmem>>, vector<128x128xf32>
    %cst = arith.constant dense<0.000000e+00> : vector<8x128xf32>
    %3 = tpu.matmul %0, %2, %cst {dimension_numbers = #tpu.dot_dimension_numbers<[1], [0], [0], [1], [0, 0, 1, 1], [], []>} : vector<8x128xf32>, vector<128x128xf32>, vector<8x128xf32> -> vector<8x128xf32>
    %4 = vector.shape_cast %1 : vector<8x64x128xf32> to vector<512x128xf32>
    %c0_6 = arith.constant 0 : index
    %c0_7 = arith.constant 0 : index
    %5 = vector.load %arg4[%c0_6, %c0_7] : memref<128x128xf32, #tpu.memory_space<vmem>>, vector<128x128xf32>
    %cst_8 = arith.constant dense<0.000000e+00> : vector<512x128xf32>
    %6 = tpu.matmul %4, %5, %cst_8 {dimension_numbers = #tpu.dot_dimension_numbers<[1], [0], [0], [1], [0, 0, 1, 1], [], []>} : vector<512x128xf32>, vector<128x128xf32>, vector<512x128xf32> -> vector<512x128xf32>
    %7 = vector.shape_cast %6 : vector<512x128xf32> to vector<8x64x128xf32>
    %8 = vector.shape_cast %3 : vector<8x128xf32> to vector<8x1x128xf32>
    %9 = vector.broadcast %8 : vector<8x1x128xf32> to vector<8x64x128xf32>
    %10 = arith.addf %9, %7 : vector<8x64x128xf32>
    %11 = math.tanh %10 : vector<8x64x128xf32>
    %c0_9 = arith.constant 0 : index
    %c0_10 = arith.constant 0 : index
    %12 = vector.load %arg5[%c0_9, %c0_10] : memref<1x128xf32, #tpu.memory_space<vmem>>, vector<1x128xf32>
    %13 = vector.shape_cast %12 : vector<1x128xf32> to vector<1x1x128xf32>
    %14 = vector.broadcast %13 : vector<1x1x128xf32> to vector<8x64x128xf32>
    %15 = arith.mulf %11, %14 : vector<8x64x128xf32>
    %cst_11 = arith.constant dense<0.000000e+00> : vector<8x64xf32>
    %16 = vector.multi_reduction <add>, %15, %cst_11 [2] : vector<8x64x128xf32> to vector<8x64xf32>
    %cst_12 = arith.constant dense<0xFF800000> : vector<8xf32>
    %17 = vector.multi_reduction <maximumf>, %16, %cst_12 [1] : vector<8x64xf32> to vector<8xf32>
    %18 = vector.shape_cast %17 : vector<8xf32> to vector<8x1xf32>
    %19 = vector.broadcast %18 : vector<8x1xf32> to vector<8x64xf32>
    %20 = arith.subf %16, %19 : vector<8x64xf32>
    %21 = math.exp %20 : vector<8x64xf32>
    %cst_13 = arith.constant dense<0.000000e+00> : vector<8xf32>
    %22 = vector.multi_reduction <add>, %21, %cst_13 [1] : vector<8x64xf32> to vector<8xf32>
    %23 = vector.shape_cast %22 : vector<8xf32> to vector<8x1xf32>
    %24 = tpu.reciprocal %23 {approx = true} : vector<8x1xf32> -> vector<8x1xf32>
    %25 = vector.broadcast %24 : vector<8x1xf32> to vector<8x64xf32>
    %26 = arith.mulf %21, %25 : vector<8x64xf32>
    %27 = vector.shape_cast %26 : vector<8x64xf32> to vector<8x64x1xf32>
    %28 = vector.broadcast %27 : vector<8x64x1xf32> to vector<8x64x128xf32>
    %29 = arith.mulf %28, %1 : vector<8x64x128xf32>
    %cst_14 = arith.constant dense<0.000000e+00> : vector<8x128xf32>
    %30 = vector.multi_reduction <add>, %29, %cst_14 [1] : vector<8x64x128xf32> to vector<8x128xf32>
    %c0_15 = arith.constant 0 : index
    %c0_16 = arith.constant 0 : index
    %31 = vector.load %arg6[%c0_15, %c0_16] : memref<8x128xf32, #tpu.memory_space<vmem>>, vector<8x128xf32>
    tpu.vector_store %arg6[%c0_15, %c0_16], %30 {strides = array<i32>} : memref<8x128xf32, #tpu.memory_space<vmem>>, vector<8x128xf32>,
    return
  }
  func.func @transform_0(%arg0: i32) -> (i32, i32) {
    %c0_i32 = arith.constant 0 : i32
    %c0_i32_0 = arith.constant 0 : i32
    return %arg0, %c0_i32 : i32, i32
  }
  func.func @transform_1(%arg0: i32) -> (i32, i32, i32) {
    %c0_i32 = arith.constant 0 : i32
    %c0_i32_0 = arith.constant 0 : i32
    %c0_i32_1 = arith.constant 0 : i32
    return %arg0, %c0_i32, %c0_i32_0 : i32, i32, i32
  }
  func.func @transform_2(%arg0: i32) -> (i32, i32) {
    %c0_i32 = arith.constant 0 : i32
    %c0_i32_0 = arith.constant 0 : i32
    %c0_i32_1 = arith.constant 0 : i32
    return %c0_i32, %c0_i32_0 : i32, i32
  }
  func.func @transform_3(%arg0: i32) -> (i32, i32) {
    %c0_i32 = arith.constant 0 : i32
    %c0_i32_0 = arith.constant 0 : i32
    %c0_i32_1 = arith.constant 0 : i32
    return %c0_i32, %c0_i32_0 : i32, i32
  }
  func.func @transform_4(%arg0: i32) -> (i32, i32) {
    %c0_i32 = arith.constant 0 : i32
    %c0_i32_0 = arith.constant 0 : i32
    %c0_i32_1 = arith.constant 0 : i32
    return %c0_i32, %c0_i32_0 : i32, i32
  }
  func.func @transform_5(%arg0: i32) -> (i32, i32) {
    %c0_i32 = arith.constant 0 : i32
    %c0_i32_0 = arith.constant 0 : i32
    return %arg0, %c0_i32 : i32, i32
  }
}

</mosaic_0001>

<llo_original>
// kernel: attention_pallas.1
$region0: #{attention_pallas.1}
  #allocation0 [shape = 'u32[]', space=smem, size = 0x4, offset = 0x4, fixed_abs, tag = 'smem constant byte address 0x4 - core index']
  #allocation1 [shape = 'u32[144,128]{1,0:T(1,128)}', space=vmem, size = 0x12000, scoped, tag = 'internal scratch']
  %s0 = inlined_call_operand.vmem [shape: f32[16,128], index: 0, kind: input, shape index: {}]
  %s1 = inlined_call_operand.hbm [shape: f32[16,64,128], index: 1, kind: input, shape index: {}]
  %s2 = inlined_call_operand.vmem [shape: f32[128,128], index: 2, kind: input, shape index: {}]
  %s3 = inlined_call_operand.vmem [shape: f32[128,128], index: 3, kind: input, shape index: {}]
  %s4 = inlined_call_operand.vmem [shape: f32[1,128], index: 4, kind: input, shape index: {}]
  %s5 = inlined_call_operand.hbm [shape: f32[16,128], index: 5, kind: output, shape index: {}]
  %s6 = sld [smem:[#allocation0]]
  $region57: #{attention_pallas.1} parent=0
    _
  %s8 = ssub.s32 1, %s6
  %s9 = scalar_select 0, %s8, %s6
  $region1: #{attention_pallas.1} parent=0
    #allocation2 [shape = 'u8[524288]{0}', space=vmem, size = 0x80000, scoped, tag = 'input window, operand 1']
    #allocation3 [shape = 's32[2]{0}', space=sflag, size = 0x8, scoped, tag = 'scoped memory for attention_pallas.1']
    #allocation4 [shape = 's32[2]{0}', space=sflag, size = 0x8, scoped, tag = 'scoped memory for attention_pallas.1']
    #allocation5 [shape = 'u8[8192]{0}', space=vmem, size = 0x2000, scoped, tag = 'output window, operand 0']
    %10 = vsyncpa [#allocation3], 0
    %s11 = scalar_lea.sflag [#allocation3], 1
    %12 = vsyncpa %s11, 0
    %13 = vsyncpa [#allocation4], 0
    %s14 = scalar_lea.sflag [#allocation4], 1
    %15 = vsyncpa %s14, 0
    loop: start=0, step=1, limit=4
    $region2: #{attention_pallas.1} parent=1 // loop_pre_header
      _
    $region3: #{attention_pallas.1} parent=1 // loop_header
      %s17 = sphi 0, %s21
      %p18 = scmp.ge.s32.totalorder %s17, 4
      %s27 = sphi 0, %s29
      %s30 = sphi 0, %s27
      %s31 = sphi 0, %s30
      %s47 = sphi 0, %s31
      %s53 = sphi 0, %s55
      %s56 = sphi 0, %s53
      %s57 = sphi 0, %s56
      %s73 = sphi 0, %s57
      %s77 = sphi 0, %s77
      %s79 = sphi 0, %s77
      %s80 = sphi 0, %s79
      %s94 = sphi 0, %s80
      %s98 = sphi 0, %s98
      %s100 = sphi 0, %s98
      %s101 = sphi 0, %s100
      %s115 = sphi 0, %s101
      %s119 = sphi 0, %s119
      %s121 = sphi 0, %s119
      %s122 = sphi 0, %s121
      %s136 = sphi 0, %s122
      %s142 = sphi 0, %s144
      %s145 = sphi 0, %s142
      %s146 = sphi 0, %s145
      %s162 = sphi 0, %s146
    $region4: #{attention_pallas.1} parent=1 // loop_header_branch
      %20 = sbr.rel (%p18) target = $region8
    $region5: #{attention_pallas.1} parent=1 // loop_body
      %s22 = ssub.s32 %s17, 1
      %s23 = ssub.s32 %s17, 2
      %s24 = sadd.s32 %s17, 1
      %s25 = ssub.s32 %s17, %s24
      %p26 = scmp.eq.s32.totalorder %s25, 0
      %s28 = sadd.s32 %s27, 1
      %s29 = scalar_select %p26, %s27, %s28
      %p32 = pneg %p26
      %p33 = scmp.eq.s32.totalorder %s17, 1
      %p34 = por %p32, %p33
      %p35 = scmp.ne.s32.totalorder %s27, %s30
      %p36 = scmp.eq.s32.totalorder %s17, 0
      %p37 = por %p35, %p36
      %p38 = scmp.ne.s32.totalorder %s27, %s30
      %p39 = scmp.eq.s32.totalorder %s22, 1
      %p40 = por %p38, %p39
      %p41 = scmp.ne.s32.totalorder %s30, %s31
      %p42 = scmp.eq.s32.totalorder %s22, 0
      %p43 = por %p41, %p42
      %p44 = scmp.ne.s32.totalorder %s30, %s31
      %p45 = scmp.eq.s32.totalorder %s23, 1
      %p46 = por %p44, %p45
      %p48 = scmp.ne.s32.totalorder %s31, %s47
      %p49 = scmp.eq.s32.totalorder %s23, 0
      %p50 = por %p48, %p49
      %s51 = ssub.s32 %s17, %s24
      %p52 = scmp.eq.s32.totalorder %s51, 0
      %s54 = sadd.s32 %s53, 1
      %s55 = scalar_select %p52, %s53, %s54
      %p58 = pneg %p52
      %p59 = scmp.eq.s32.totalorder %s17, 1
      %p60 = por %p58, %p59
      %p61 = scmp.ne.s32.totalorder %s53, %s56
      %p62 = scmp.eq.s32.totalorder %s17, 0
      %p63 = por %p61, %p62
      %p64 = scmp.ne.s32.totalorder %s53, %s56
      %p65 = scmp.eq.s32.totalorder %s22, 1
      %p66 = por %p64, %p65
      %p67 = scmp.ne.s32.totalorder %s56, %s57
      %p68 = scmp.eq.s32.totalorder %s22, 0
      %p69 = por %p67, %p68
      %p70 = scmp.ne.s32.totalorder %s56, %s57
      %p71 = scmp.eq.s32.totalorder %s23, 1
      %p72 = por %p70, %p71
      %p74 = scmp.ne.s32.totalorder %s57, %s73
      %p75 = scmp.eq.s32.totalorder %s23, 0
      %p76 = por %p74, %p75
      %s78 = sadd.s32 %s77, 1
      %p81 = scmp.eq.s32.totalorder %s17, 1
      %p82 = scmp.ne.s32.totalorder %s77, %s79
      %p83 = scmp.eq.s32.totalorder %s17, 0
      %p84 = por %p82, %p83
      %p85 = scmp.ne.s32.totalorder %s77, %s79
      %p86 = scmp.eq.s32.totalorder %s22, 1
      %p87 = por %p85, %p86
      %p88 = scmp.ne.s32.totalorder %s79, %s80
      %p89 = scmp.eq.s32.totalorder %s22, 0
      %p90 = por %p88, %p89
      %p91 = scmp.ne.s32.totalorder %s79, %s80
      %p92 = scmp.eq.s32.totalorder %s23, 1
      %p93 = por %p91, %p92
      %p95 = scmp.ne.s32.totalorder %s80, %s94
      %p96 = scmp.eq.s32.totalorder %s23, 0
      %p97 = por %p95, %p96
      %s99 = sadd.s32 %s98, 1
      %p102 = scmp.eq.s32.totalorder %s17, 1
      %p103 = scmp.ne.s32.totalorder %s98, %s100
      %p104 = scmp.eq.s32.totalorder %s17, 0
      %p105 = por %p103, %p104
      %p106 = scmp.ne.s32.totalorder %s98, %s100
      %p107 = scmp.eq.s32.totalorder %s22, 1
      %p108 = por %p106, %p107
      %p109 = scmp.ne.s32.totalorder %s100, %s101
      %p110 = scmp.eq.s32.totalorder %s22, 0
      %p111 = por %p109, %p110
      %p112 = scmp.ne.s32.totalorder %s100, %s101
      %p113 = scmp.eq.s32.totalorder %s23, 1
      %p114 = por %p112, %p113
      %p116 = scmp.ne.s32.totalorder %s101, %s115
      %p117 = scmp.eq.s32.totalorder %s23, 0
      %p118 = por %p116, %p117
      %s120 = sadd.s32 %s119, 1
      %p123 = scmp.eq.s32.totalorder %s17, 1
      %p124 = scmp.ne.s32.totalorder %s119, %s121
      %p125 = scmp.eq.s32.totalorder %s17, 0
      %p126 = por %p124, %p125
      %p127 = scmp.ne.s32.totalorder %s119, %s121
      %p128 = scmp.eq.s32.totalorder %s22, 1
      %p129 = por %p127, %p128
      %p130 = scmp.ne.s32.totalorder %s121, %s122
      %p131 = scmp.eq.s32.totalorder %s22, 0
      %p132 = por %p130, %p131
      %p133 = scmp.ne.s32.totalorder %s121, %s122
      %p134 = scmp.eq.s32.totalorder %s23, 1
      %p135 = por %p133, %p134
      %p137 = scmp.ne.s32.totalorder %s122, %s136
      %p138 = scmp.eq.s32.totalorder %s23, 0
      %p139 = por %p137, %p138
      %s140 = ssub.s32 %s17, %s24
      %p141 = scmp.eq.s32.totalorder %s140, 0
      %s143 = sadd.s32 %s142, 1
      %s144 = scalar_select %p141, %s142, %s143
      %p147 = pneg %p141
      %p148 = scmp.eq.s32.totalorder %s17, 1
      %p149 = por %p147, %p148
      %p150 = scmp.ne.s32.totalorder %s142, %s145
      %p151 = scmp.eq.s32.totalorder %s17, 0
      %p152 = por %p150, %p151
      %p153 = scmp.ne.s32.totalorder %s142, %s145
      %p154 = scmp.eq.s32.totalorder %s22, 1
      %p155 = por %p153, %p154
      %p156 = scmp.ne.s32.totalorder %s145, %s146
      %p157 = scmp.eq.s32.totalorder %s22, 0
      %p158 = por %p156, %p157
      %p159 = scmp.ne.s32.totalorder %s145, %s146
      %p160 = scmp.eq.s32.totalorder %s23, 1
      %p161 = por %p159, %p160
      %p163 = scmp.ne.s32.totalorder %s146, %s162
      %p164 = scmp.eq.s32.totalorder %s23, 0
      %p165 = por %p163, %p164
      %p166 = scmp.le.s32.totalorder 1, %s17
      %p167 = scmp.lt.s32.totalorder %s17, 3
      %p168 = pnand %p166, %p167
      %p169 = pneg %p168
      // Predicated region
      $region9: #{attention_pallas.1} parent=5 // pred_check
        _
      $region10: #{attention_pallas.1} parent=5 // pred_check_branch
        %171 = sbr.rel (%p168) target = $region12
      $region11: #{attention_pallas.1} parent=5 // pred_region
        %s172 = ssub.s32 %s17, 1
        // Predicated region
        $region13: #{attention_pallas.1} parent=11 // pred_check
          %p173 = pneg %p90
        $region14: #{attention_pallas.1} parent=11 // pred_check_branch
          %175 = sbr.rel (%p173) target = $region16
        $region15: #{attention_pallas.1} parent=11 // pred_region
          _
        $region16: #{attention_pallas.1} parent=11 // pred_fallthru
          _
        // Predicated region
        $region17: #{attention_pallas.1} parent=11 // pred_check
          %p176 = pneg %p111
        $region18: #{attention_pallas.1} parent=11 // pred_check_branch
          %178 = sbr.rel (%p176) target = $region20
        $region19: #{attention_pallas.1} parent=11 // pred_region
          _
        $region20: #{attention_pallas.1} parent=11 // pred_fallthru
          _
        // Predicated region
        $region21: #{attention_pallas.1} parent=11 // pred_check
          %p179 = pneg %p132
        $region22: #{attention_pallas.1} parent=11 // pred_check_branch
          %181 = sbr.rel (%p179) target = $region24
        $region23: #{attention_pallas.1} parent=11 // pred_region
          _
        $region24: #{attention_pallas.1} parent=11 // pred_fallthru
          _
      $region12: #{attention_pallas.1} parent=5 // pred_fallthru
        _
      %p182 = scmp.lt.s32.totalorder %s17, 2
      // Predicated region
      $region25: #{attention_pallas.1} parent=5 // pred_check
        %p183 = pneg %p182
      $region26: #{attention_pallas.1} parent=5 // pred_check_branch
        %185 = sbr.rel (%p183) target = $region28
      $region27: #{attention_pallas.1} parent=5 // pred_region
        // Predicated region
        $region29: #{attention_pallas.1} parent=27 // pred_check
          %p186 = pneg %p37
        $region30: #{attention_pallas.1} parent=27 // pred_check_branch
          %188 = sbr.rel (%p186) target = $region32
        $region31: #{attention_pallas.1} parent=27 // pred_region
          %p189 = scmp.lt.s32.totalorder %s17, 1
          %s190 = scalar_select %p189, %s17, 1
          %s191 = smul.addr %s190, 8
          %s192 = scalar_lea.vmem %s0, %s191
        $region32: #{attention_pallas.1} parent=27 // pred_fallthru
          _
        // Predicated region
        $region33: #{attention_pallas.1} parent=27 // pred_check
          %p193 = pneg %p63
        $region34: #{attention_pallas.1} parent=27 // pred_check_branch
          %195 = sbr.rel (%p193) target = $region36
        $region35: #{attention_pallas.1} parent=27 // pred_region
          %s196 = sand.u32 %s53, 1
          %s197 = scalar_lea.sflag [#allocation3], %s196
          %s198 = sand.u32 %s53, 1
          %s199 = smul.addr %s198, 512
          %s200 = scalar_lea.vmem [#allocation2], %s199
          %s201 = smul.u32 8, %s17
          %s203 = ssub.s32 8192, 8192
          %204 = vsyncadd %s197, %s203
          %s205 = smul.addr %s201, 8
          %s206 = smul.addr %s205, 128
          %s207 = scalar_lea.hbm %s1, %s206
          %s208 = sshll.u32 %s200, 4
          %s209 = int_to_ptr.vmem [resolvable:$true] %s208
          %214 = dma.hbm_to_vmem [thread:$0]  %s207, 8192, %s209, %s197, 128, 128, 8
        $region36: #{attention_pallas.1} parent=27 // pred_fallthru
          _
      $region28: #{attention_pallas.1} parent=5 // pred_fallthru
        _
      %p215 = scmp.le.s32.totalorder 1, %s17
      %p216 = scmp.lt.s32.totalorder %s17, 3
      %p217 = pnand %p215, %p216
      %p218 = pneg %p217
      // Predicated region
      $region37: #{attention_pallas.1} parent=5 // pred_check
        _
      $region38: #{attention_pallas.1} parent=5 // pred_check_branch
        %220 = sbr.rel (%p217) target = $region40
      $region39: #{attention_pallas.1} parent=5 // pred_region
        %s221 = ssub.s32 %s17, 1
        %s222 = sand.u32 %s56, 1
        %s223 = scalar_lea.sflag [#allocation3], %s222
        %s224 = sand.u32 %s56, 1
        %s225 = smul.addr %s224, 512
        %s226 = scalar_lea.vmem [#allocation2], %s225
        // Predicated region
        $region41: #{attention_pallas.1} parent=39 // pred_check
          %p227 = pneg %p69
        $region42: #{attention_pallas.1} parent=39 // pred_check_branch
          %229 = sbr.rel (%p227) target = $region44
        $region43: #{attention_pallas.1} parent=39 // pred_region
          %230 = dma.done %s223, 8192
        $region44: #{attention_pallas.1} parent=39 // pred_fallthru
          _
        %p231 = scmp.lt.s32.totalorder %s22, 1
        %s232 = scalar_select %p231, %s22, 1
        %s233 = smul.addr %s232, 8
        %s234 = scalar_lea.vmem %s0, %s233
        %p235 = pneg %p43
        %p236 = pneg %p40
        %s237 = sand.u32 %s56, 1
        %s238 = scalar_lea.sflag [#allocation3], %s237
        %s239 = sand.u32 %s56, 1
        %s240 = smul.addr %s239, 512
        %s241 = scalar_lea.vmem [#allocation2], %s240
        %p242 = pneg %p69
        %p243 = pneg %p66
        %p244 = pneg %p90
        %p245 = pneg %p87
        %p246 = pneg %p111
        %p247 = pneg %p108
        %p248 = pneg %p132
        %p249 = pneg %p129
        %p250 = pneg %p158
        %p251 = pneg %p155
        %s252 = sand.u32 %s145, 1
        %s253 = scalar_lea.sflag [#allocation4], %s252
        %s254 = sand.u32 %s145, 1
        %s255 = smul.addr %s254, 8
        %s256 = scalar_lea.vmem [#allocation5], %s255
        %p257 = scmp.lt.s32.totalorder %s22, 1
        %s258 = scalar_select %p257, %s22, 1
        %s259 = smul.addr %s258, 8
        %s260 = scalar_lea.vmem %s0, %s259
        %s261 = smul.u32 8, %s22
        %v262 = vld [vmem:[%s260] sm:$0xff]
        %v263 = vld [vmem:[%s226] sm:$0xff]
        %v264 = vld [vmem:[%s226 + $0x8] sm:$0xff]
        %v265 = vld [vmem:[%s226 + $0x10] sm:$0xff]
        %v266 = vld [vmem:[%s226 + $0x18] sm:$0xff]
        %v267 = vld [vmem:[%s226 + $0x20] sm:$0xff]
        %v268 = vld [vmem:[%s226 + $0x28] sm:$0xff]
        %v269 = vld [vmem:[%s226 + $0x30] sm:$0xff]
        %v270 = vld [vmem:[%s226 + $0x38] sm:$0xff]
        %v271 = vld [vmem:[%s226 + $0x40] sm:$0xff]
        %v272 = vld [vmem:[%s226 + $0x48] sm:$0xff]
        %v273 = vld [vmem:[%s226 + $0x50] sm:$0xff]
        %v274 = vld [vmem:[%s226 + $0x58] sm:$0xff]
        %v275 = vld [vmem:[%s226 + $0x60] sm:$0xff]
        %v276 = vld [vmem:[%s226 + $0x68] sm:$0xff]
        %v277 = vld [vmem:[%s226 + $0x70] sm:$0xff]
        %v278 = vld [vmem:[%s226 + $0x78] sm:$0xff]
        %v279 = vld [vmem:[%s226 + $0x80] sm:$0xff]
        %v280 = vld [vmem:[%s226 + $0x88] sm:$0xff]
        %v281 = vld [vmem:[%s226 + $0x90] sm:$0xff]
        %v282 = vld [vmem:[%s226 + $0x98] sm:$0xff]
        %v283 = vld [vmem:[%s226 + $0xa0] sm:$0xff]
        %v284 = vld [vmem:[%s226 + $0xa8] sm:$0xff]
        %v285 = vld [vmem:[%s226 + $0xb0] sm:$0xff]
        %v286 = vld [vmem:[%s226 + $0xb8] sm:$0xff]
        %v287 = vld [vmem:[%s226 + $0xc0] sm:$0xff]
        %v288 = vld [vmem:[%s226 + $0xc8] sm:$0xff]
        %v289 = vld [vmem:[%s226 + $0xd0] sm:$0xff]
        %v290 = vld [vmem:[%s226 + $0xd8] sm:$0xff]
        %v291 = vld [vmem:[%s226 + $0xe0] sm:$0xff]
        %v292 = vld [vmem:[%s226 + $0xe8] sm:$0xff]
        %v293 = vld [vmem:[%s226 + $0xf0] sm:$0xff]
        %v294 = vld [vmem:[%s226 + $0xf8] sm:$0xff]
        %v295 = vld [vmem:[%s226 + $0x100] sm:$0xff]
        %v296 = vld [vmem:[%s226 + $0x108] sm:$0xff]
        %v297 = vld [vmem:[%s226 + $0x110] sm:$0xff]
        %v298 = vld [vmem:[%s226 + $0x118] sm:$0xff]
        %v299 = vld [vmem:[%s226 + $0x120] sm:$0xff]
        %v300 = vld [vmem:[%s226 + $0x128] sm:$0xff]
        %v301 = vld [vmem:[%s226 + $0x130] sm:$0xff]
        %v302 = vld [vmem:[%s226 + $0x138] sm:$0xff]
        %v303 = vld [vmem:[%s226 + $0x140] sm:$0xff]
        %v304 = vld [vmem:[%s226 + $0x148] sm:$0xff]
        %v305 = vld [vmem:[%s226 + $0x150] sm:$0xff]
        %v306 = vld [vmem:[%s226 + $0x158] sm:$0xff]
        %v307 = vld [vmem:[%s226 + $0x160] sm:$0xff]
        %v308 = vld [vmem:[%s226 + $0x168] sm:$0xff]
        %v309 = vld [vmem:[%s226 + $0x170] sm:$0xff]
        %v310 = vld [vmem:[%s226 + $0x178] sm:$0xff]
        %v311 = vld [vmem:[%s226 + $0x180] sm:$0xff]
        %v312 = vld [vmem:[%s226 + $0x188] sm:$0xff]
        %v313 = vld [vmem:[%s226 + $0x190] sm:$0xff]
        %v314 = vld [vmem:[%s226 + $0x198] sm:$0xff]
        %v315 = vld [vmem:[%s226 + $0x1a0] sm:$0xff]
        %v316 = vld [vmem:[%s226 + $0x1a8] sm:$0xff]
        %v317 = vld [vmem:[%s226 + $0x1b0] sm:$0xff]
        %v318 = vld [vmem:[%s226 + $0x1b8] sm:$0xff]
        %v319 = vld [vmem:[%s226 + $0x1c0] sm:$0xff]
        %v320 = vld [vmem:[%s226 + $0x1c8] sm:$0xff]
        %v321 = vld [vmem:[%s226 + $0x1d0] sm:$0xff]
        %v322 = vld [vmem:[%s226 + $0x1d8] sm:$0xff]
        %v323 = vld [vmem:[%s226 + $0x1e0] sm:$0xff]
        %v324 = vld [vmem:[%s226 + $0x1e8] sm:$0xff]
        %v325 = vld [vmem:[%s226 + $0x1f0] sm:$0xff]
        %v326 = vld [vmem:[%s226 + $0x1f8] sm:$0xff]
        %v327 = vld [vmem:[%s2] sm:$0xff]
        %v328 = vld [vmem:[%s2 + $0x8] sm:$0xff]
        %v329 = vld [vmem:[%s2 + $0x10] sm:$0xff]
        %v330 = vld [vmem:[%s2 + $0x18] sm:$0xff]
        %v331 = vld [vmem:[%s2 + $0x20] sm:$0xff]
        %v332 = vld [vmem:[%s2 + $0x28] sm:$0xff]
        %v333 = vld [vmem:[%s2 + $0x30] sm:$0xff]
        %v334 = vld [vmem:[%s2 + $0x38] sm:$0xff]
        %v335 = vld [vmem:[%s2 + $0x40] sm:$0xff]
        %v336 = vld [vmem:[%s2 + $0x48] sm:$0xff]
        %v337 = vld [vmem:[%s2 + $0x50] sm:$0xff]
        %v338 = vld [vmem:[%s2 + $0x58] sm:$0xff]
        %v339 = vld [vmem:[%s2 + $0x60] sm:$0xff]
        %v340 = vld [vmem:[%s2 + $0x68] sm:$0xff]
        %v341 = vld [vmem:[%s2 + $0x70] sm:$0xff]
        %v342 = vld [vmem:[%s2 + $0x78] sm:$0xff]
        %343 = vmatprep.subr.mxu0 0.0
        %344 = vmatpush1.msra.mxu0 %v327
        %345 = vmatprep.subr.mxu0 0.0
        %346 = vmatpush1.msra.mxu0 %v328
        %347 = vmatprep.subr.mxu0 0.0
        %348 = vmatpush1.msra.mxu0 %v329
        %349 = vmatprep.subr.mxu0 0.0
        %350 = vmatpush1.msra.mxu0 %v330
        %351 = vmatprep.subr.mxu0 0.0
        %352 = vmatpush1.msra.mxu0 %v331
        %353 = vmatprep.subr.mxu0 0.0
        %354 = vmatpush1.msra.mxu0 %v332
        %355 = vmatprep.subr.mxu0 0.0
        %356 = vmatpush1.msra.mxu0 %v333
        %357 = vmatprep.subr.mxu0 0.0
        %358 = vmatpush1.msra.mxu0 %v334
        %359 = vmatprep.subr.mxu0 0.0
        %360 = vmatpush1.msra.mxu0 %v335
        %361 = vmatprep.subr.mxu0 0.0
        %362 = vmatpush1.msra.mxu0 %v336
        %363 = vmatprep.subr.mxu0 0.0
        %364 = vmatpush1.msra.mxu0 %v337
        %365 = vmatprep.subr.mxu0 0.0
        %366 = vmatpush1.msra.mxu0 %v338
        %367 = vmatprep.subr.mxu0 0.0
        %368 = vmatpush1.msra.mxu0 %v339
        %369 = vmatprep.subr.mxu0 0.0
        %370 = vmatpush1.msra.mxu0 %v340
        %371 = vmatprep.subr.mxu0 0.0
        %372 = vmatpush1.msra.mxu0 %v341
        %373 = vmatprep.subr.mxu0 0.0
        %374 = vmatpush1.msra.mxu0 %v342
        %375 = vmatprep.subr.mxu0 0.0
        %376 = vmatpush1.msra.mxu0 0.0
        %377 = vmatprep.subr.mxu0 0.0
        %378 = vmatpush1.msra.mxu0 0.0
        %379 = vmatprep.subr.mxu0 0.0
        %380 = vmatpush1.msra.mxu0 0.0
        %381 = vmatprep.subr.mxu0 0.0
        %382 = vmatpush1.msra.mxu0 0.0
        %383 = vmatprep.subr.mxu0 0.0
        %384 = vmatpush1.msra.mxu0 0.0
        %385 = vmatprep.subr.mxu0 0.0
        %386 = vmatpush1.msra.mxu0 0.0
        %387 = vmatprep.subr.mxu0 0.0
        %388 = vmatpush1.msra.mxu0 0.0
        %389 = vmatprep.subr.mxu0 0.0
        %390 = vmatpush1.msra.mxu0 0.0
        %391 = vmatprep.subr.mxu0 0.0
        %392 = vmatpush1.msra.mxu0 0.0
        %393 = vmatprep.subr.mxu0 0.0
        %394 = vmatpush1.msra.mxu0 0.0
        %395 = vmatprep.subr.mxu0 0.0
        %396 = vmatpush1.msra.mxu0 0.0
        %397 = vmatprep.subr.mxu0 0.0
        %398 = vmatpush1.msra.mxu0 0.0
        %399 = vmatprep.subr.mxu0 0.0
        %400 = vmatpush1.msra.mxu0 0.0
        %401 = vmatprep.subr.mxu0 0.0
        %402 = vmatpush1.msra.mxu0 0.0
        %403 = vmatprep.subr.mxu0 0.0
        %404 = vmatpush1.msra.mxu0 0.0
        %405 = vmatprep.subr.mxu0 0.0
        %406 = vmatpush1.msra.mxu0 0.0
        %407 = vmatprep.mubr.f32.mxu0 0.0
        %408 = vmatmul.mubr.f32.gmra.mrb[0].mxu0 %v262
        %v409 = vpop.f32.mrb[0].mxu0
        %v410 = vadd.f32 0.0, %v409
        %v411 = vpop.f32.mrb[0].mxu0
        %412 = vdwg.mxu0
        %v413 = vld [vmem:[%s3] sm:$0xff]
        %v414 = vld [vmem:[%s3 + $0x8] sm:$0xff]
        %v415 = vld [vmem:[%s3 + $0x10] sm:$0xff]
        %v416 = vld [vmem:[%s3 + $0x18] sm:$0xff]
        %v417 = vld [vmem:[%s3 + $0x20] sm:$0xff]
        %v418 = vld [vmem:[%s3 + $0x28] sm:$0xff]
        %v419 = vld [vmem:[%s3 + $0x30] sm:$0xff]
        %v420 = vld [vmem:[%s3 + $0x38] sm:$0xff]
        %v421 = vld [vmem:[%s3 + $0x40] sm:$0xff]
        %v422 = vld [vmem:[%s3 + $0x48] sm:$0xff]
        %v423 = vld [vmem:[%s3 + $0x50] sm:$0xff]
        %v424 = vld [vmem:[%s3 + $0x58] sm:$0xff]
        %v425 = vld [vmem:[%s3 + $0x60] sm:$0xff]
        %v426 = vld [vmem:[%s3 + $0x68] sm:$0xff]
        %v427 = vld [vmem:[%s3 + $0x70] sm:$0xff]
        %v428 = vld [vmem:[%s3 + $0x78] sm:$0xff]
        %429 = vmatprep.subr.mxu0 0.0
        %430 = vmatpush1.msra.mxu0 %v413
        %431 = vmatprep.subr.mxu0 0.0
        %432 = vmatpush1.msra.mxu0 %v414
        %433 = vmatprep.subr.mxu0 0.0
        %434 = vmatpush1.msra.mxu0 %v415
        %435 = vmatprep.subr.mxu0 0.0
        %436 = vmatpush1.msra.mxu0 %v416
        %437 = vmatprep.subr.mxu0 0.0
        %438 = vmatpush1.msra.mxu0 %v417
        %439 = vmatprep.subr.mxu0 0.0
        %440 = vmatpush1.msra.mxu0 %v418
        %441 = vmatprep.subr.mxu0 0.0
        %442 = vmatpush1.msra.mxu0 %v419
        %443 = vmatprep.subr.mxu0 0.0
        %444 = vmatpush1.msra.mxu0 %v420
        %445 = vmatprep.subr.mxu0 0.0
        %446 = vmatpush1.msra.mxu0 %v421
        %447 = vmatprep.subr.mxu0 0.0
        %448 = vmatpush1.msra.mxu0 %v422
        %449 = vmatprep.subr.mxu0 0.0
        %450 = vmatpush1.msra.mxu0 %v423
        %451 = vmatprep.subr.mxu0 0.0
        %452 = vmatpush1.msra.mxu0 %v424
        %453 = vmatprep.subr.mxu0 0.0
        %454 = vmatpush1.msra.mxu0 %v425
        %455 = vmatprep.subr.mxu0 0.0
        %456 = vmatpush1.msra.mxu0 %v426
        %457 = vmatprep.subr.mxu0 0.0
        %458 = vmatpush1.msra.mxu0 %v427
        %459 = vmatprep.subr.mxu0 0.0
        %460 = vmatpush1.msra.mxu0 %v428
        %461 = vmatprep.subr.mxu0 0.0
        %462 = vmatpush1.msra.mxu0 0.0
        %463 = vmatprep.subr.mxu0 0.0
        %464 = vmatpush1.msra.mxu0 0.0
        %465 = vmatprep.subr.mxu0 0.0
        %466 = vmatpush1.msra.mxu0 0.0
        %467 = vmatprep.subr.mxu0 0.0
        %468 = vmatpush1.msra.mxu0 0.0
        %469 = vmatprep.subr.mxu0 0.0
        %470 = vmatpush1.msra.mxu0 0.0
        %471 = vmatprep.subr.mxu0 0.0
        %472 = vmatpush1.msra.mxu0 0.0
        %473 = vmatprep.subr.mxu0 0.0
        %474 = vmatpush1.msra.mxu0 0.0
        %475 = vmatprep.subr.mxu0 0.0
        %476 = vmatpush1.msra.mxu0 0.0
        %477 = vmatprep.subr.mxu0 0.0
        %478 = vmatpush1.msra.mxu0 0.0
        %479 = vmatprep.subr.mxu0 0.0
        %480 = vmatpush1.msra.mxu0 0.0
        %481 = vmatprep.subr.mxu0 0.0
        %482 = vmatpush1.msra.mxu0 0.0
        %483 = vmatprep.subr.mxu0 0.0
        %484 = vmatpush1.msra.mxu0 0.0
        %485 = vmatprep.subr.mxu0 0.0
        %486 = vmatpush1.msra.mxu0 0.0
        %487 = vmatprep.subr.mxu0 0.0
        %488 = vmatpush1.msra.mxu0 0.0
        %489 = vmatprep.subr.mxu0 0.0
        %490 = vmatpush1.msra.mxu0 0.0
        %491 = vmatprep.subr.mxu0 0.0
        %492 = vmatpush1.msra.mxu0 0.0
        %493 = vmatprep.mubr.f32.mxu0 0.0
        %494 = vmatmul.mubr.f32.gmra.mrb[0].mxu0 %v263
        %v495 = vpop.f32.mrb[0].mxu0
        %v496 = vadd.f32 0.0, %v495
        %v497 = vpop.f32.mrb[0].mxu0
        %498 = vmatprep.mubr.f32.mxu0 0.0
        %499 = vmatmul.mubr.f32.gmra.mrb[0].mxu0 %v264
        %v500 = vpop.f32.mrb[0].mxu0
        %v501 = vadd.f32 0.0, %v500
        %v502 = vpop.f32.mrb[0].mxu0
        %503 = vmatprep.mubr.f32.mxu0 0.0
        %504 = vmatmul.mubr.f32.gmra.mrb[0].mxu0 %v265
        %v505 = vpop.f32.mrb[0].mxu0
        %v506 = vadd.f32 0.0, %v505
        %v507 = vpop.f32.mrb[0].mxu0
        %508 = vmatprep.mubr.f32.mxu0 0.0
        %509 = vmatmul.mubr.f32.gmra.mrb[0].mxu0 %v266
        %v510 = vpop.f32.mrb[0].mxu0
        %v511 = vadd.f32 0.0, %v510
        %v512 = vpop.f32.mrb[0].mxu0
        %513 = vmatprep.mubr.f32.mxu0 0.0
        %514 = vmatmul.mubr.f32.gmra.mrb[0].mxu0 %v267
        %v515 = vpop.f32.mrb[0].mxu0
        %v516 = vadd.f32 0.0, %v515
        %v517 = vpop.f32.mrb[0].mxu0
        %518 = vmatprep.mubr.f32.mxu0 0.0
        %519 = vmatmul.mubr.f32.gmra.mrb[0].mxu0 %v268
        %v520 = vpop.f32.mrb[0].mxu0
        %v521 = vadd.f32 0.0, %v520
        %v522 = vpop.f32.mrb[0].mxu0
        %523 = vmatprep.mubr.f32.mxu0 0.0
        %524 = vmatmul.mubr.f32.gmra.mrb[0].mxu0 %v269
        %v525 = vpop.f32.mrb[0].mxu0
        %v526 = vadd.f32 0.0, %v525
        %v527 = vpop.f32.mrb[0].mxu0
        %528 = vmatprep.mubr.f32.mxu0 0.0
        %529 = vmatmul.mubr.f32.gmra.mrb[0].mxu0 %v270
        %v530 = vpop.f32.mrb[0].mxu0
        %v531 = vadd.f32 0.0, %v530
        %v532 = vpop.f32.mrb[0].mxu0
        %533 = vmatprep.mubr.f32.mxu0 0.0
        %534 = vmatmul.mubr.f32.gmra.mrb[0].mxu0 %v271
        %v535 = vpop.f32.mrb[0].mxu0
        %v536 = vadd.f32 0.0, %v535
        %v537 = vpop.f32.mrb[0].mxu0
        %538 = vmatprep.mubr.f32.mxu0 0.0
        %539 = vmatmul.mubr.f32.gmra.mrb[0].mxu0 %v272
        %v540 = vpop.f32.mrb[0].mxu0
        %v541 = vadd.f32 0.0, %v540
        %v542 = vpop.f32.mrb[0].mxu0
        %543 = vmatprep.mubr.f32.mxu0 0.0
        %544 = vmatmul.mubr.f32.gmra.mrb[0].mxu0 %v273
        %v545 = vpop.f32.mrb[0].mxu0
        %v546 = vadd.f32 0.0, %v545
        %v547 = vpop.f32.mrb[0].mxu0
        %548 = vmatprep.mubr.f32.mxu0 0.0
        %549 = vmatmul.mubr.f32.gmra.mrb[0].mxu0 %v274
        %v550 = vpop.f32.mrb[0].mxu0
        %v551 = vadd.f32 0.0, %v550
        %v552 = vpop.f32.mrb[0].mxu0
        %553 = vmatprep.mubr.f32.mxu0 0.0
        %554 = vmatmul.mubr.f32.gmra.mrb[0].mxu0 %v275
        %v555 = vpop.f32.mrb[0].mxu0
        %v556 = vadd.f32 0.0, %v555
        %v557 = vpop.f32.mrb[0].mxu0
        %558 = vmatprep.mubr.f32.mxu0 0.0
        %559 = vmatmul.mubr.f32.gmra.mrb[0].mxu0 %v276
        %v560 = vpop.f32.mrb[0].mxu0
        %v561 = vadd.f32 0.0, %v560
        %v562 = vpop.f32.mrb[0].mxu0
        %563 = vmatprep.mubr.f32.mxu0 0.0
        %564 = vmatmul.mubr.f32.gmra.mrb[0].mxu0 %v277
        %v565 = vpop.f32.mrb[0].mxu0
        %v566 = vadd.f32 0.0, %v565
        %v567 = vpop.f32.mrb[0].mxu0
        %568 = vmatprep.mubr.f32.mxu0 0.0
        %569 = vmatmul.mubr.f32.gmra.mrb[0].mxu0 %v278
        %v570 = vpop.f32.mrb[0].mxu0
        %v571 = vadd.f32 0.0, %v570
        %v572 = vpop.f32.mrb[0].mxu0
        %573 = vmatprep.mubr.f32.mxu0 0.0
        %574 = vmatmul.mubr.f32.gmra.mrb[0].mxu0 %v279
        %v575 = vpop.f32.mrb[0].mxu0
        %v576 = vadd.f32 0.0, %v575
        %v577 = vpop.f32.mrb[0].mxu0
        %578 = vmatprep.mubr.f32.mxu0 0.0
        %579 = vmatmul.mubr.f32.gmra.mrb[0].mxu0 %v280
        %v580 = vpop.f32.mrb[0].mxu0
        %v581 = vadd.f32 0.0, %v580
        %v582 = vpop.f32.mrb[0].mxu0
        %583 = vmatprep.mubr.f32.mxu0 0.0
        %584 = vmatmul.mubr.f32.gmra.mrb[0].mxu0 %v281
        %v585 = vpop.f32.mrb[0].mxu0
        %v586 = vadd.f32 0.0, %v585
        %v587 = vpop.f32.mrb[0].mxu0
        %588 = vmatprep.mubr.f32.mxu0 0.0
        %589 = vmatmul.mubr.f32.gmra.mrb[0].mxu0 %v282
        %v590 = vpop.f32.mrb[0].mxu0
        %v591 = vadd.f32 0.0, %v590
        %v592 = vpop.f32.mrb[0].mxu0
        %593 = vmatprep.mubr.f32.mxu0 0.0
        %594 = vmatmul.mubr.f32.gmra.mrb[0].mxu0 %v283
        %v595 = vpop.f32.mrb[0].mxu0
        %v596 = vadd.f32 0.0, %v595
        %v597 = vpop.f32.mrb[0].mxu0
        %598 = vmatprep.mubr.f32.mxu0 0.0
        %599 = vmatmul.mubr.f32.gmra.mrb[0].mxu0 %v284
        %v600 = vpop.f32.mrb[0].mxu0
        %v601 = vadd.f32 0.0, %v600
        %v602 = vpop.f32.mrb[0].mxu0
        %603 = vmatprep.mubr.f32.mxu0 0.0
        %604 = vmatmul.mubr.f32.gmra.mrb[0].mxu0 %v285
        %v605 = vpop.f32.mrb[0].mxu0
        %v606 = vadd.f32 0.0, %v605
        %v607 = vpop.f32.mrb[0].mxu0
        %608 = vmatprep.mubr.f32.mxu0 0.0
        %609 = vmatmul.mubr.f32.gmra.mrb[0].mxu0 %v286
        %v610 = vpop.f32.mrb[0].mxu0
        %v611 = vadd.f32 0.0, %v610
        %v612 = vpop.f32.mrb[0].mxu0
        %613 = vmatprep.mubr.f32.mxu0 0.0
        %614 = vmatmul.mubr.f32.gmra.mrb[0].mxu0 %v287
        %v615 = vpop.f32.mrb[0].mxu0
        %v616 = vadd.f32 0.0, %v615
        %v617 = vpop.f32.mrb[0].mxu0
        %618 = vmatprep.mubr.f32.mxu0 0.0
        %619 = vmatmul.mubr.f32.gmra.mrb[0].mxu0 %v288
        %v620 = vpop.f32.mrb[0].mxu0
        %v621 = vadd.f32 0.0, %v620
        %v622 = vpop.f32.mrb[0].mxu0
        %623 = vmatprep.mubr.f32.mxu0 0.0
        %624 = vmatmul.mubr.f32.gmra.mrb[0].mxu0 %v289
        %v625 = vpop.f32.mrb[0].mxu0
        %v626 = vadd.f32 0.0, %v625
        %v627 = vpop.f32.mrb[0].mxu0
        %628 = vmatprep.mubr.f32.mxu0 0.0
        %629 = vmatmul.mubr.f32.gmra.mrb[0].mxu0 %v290
        %v630 = vpop.f32.mrb[0].mxu0
        %v631 = vadd.f32 0.0, %v630
        %v632 = vpop.f32.mrb[0].mxu0
        %633 = vmatprep.mubr.f32.mxu0 0.0
        %634 = vmatmul.mubr.f32.gmra.mrb[0].mxu0 %v291
        %v635 = vpop.f32.mrb[0].mxu0
        %v636 = vadd.f32 0.0, %v635
        %v637 = vpop.f32.mrb[0].mxu0
        %638 = vmatprep.mubr.f32.mxu0 0.0
        %639 = vmatmul.mubr.f32.gmra.mrb[0].mxu0 %v292
        %v640 = vpop.f32.mrb[0].mxu0
        %v641 = vadd.f32 0.0, %v640
        %v642 = vpop.f32.mrb[0].mxu0
        %643 = vmatprep.mubr.f32.mxu0 0.0
        %644 = vmatmul.mubr.f32.gmra.mrb[0].mxu0 %v293
        %v645 = vpop.f32.mrb[0].mxu0
        %v646 = vadd.f32 0.0, %v645
        %v647 = vpop.f32.mrb[0].mxu0
        %648 = vmatprep.mubr.f32.mxu0 0.0
        %649 = vmatmul.mubr.f32.gmra.mrb[0].mxu0 %v294
        %v650 = vpop.f32.mrb[0].mxu0
        %v651 = vadd.f32 0.0, %v650
        %v652 = vpop.f32.mrb[0].mxu0
        %653 = vmatprep.mubr.f32.mxu0 0.0
        %654 = vmatmul.mubr.f32.gmra.mrb[0].mxu0 %v295
        %v655 = vpop.f32.mrb[0].mxu0
        %v656 = vadd.f32 0.0, %v655
        %v657 = vpop.f32.mrb[0].mxu0
        %658 = vmatprep.mubr.f32.mxu0 0.0
        %659 = vmatmul.mubr.f32.gmra.mrb[0].mxu0 %v296
        %v660 = vpop.f32.mrb[0].mxu0
        %v661 = vadd.f32 0.0, %v660
        %v662 = vpop.f32.mrb[0].mxu0
        %663 = vmatprep.mubr.f32.mxu0 0.0
        %664 = vmatmul.mubr.f32.gmra.mrb[0].mxu0 %v297
        %v665 = vpop.f32.mrb[0].mxu0
        %v666 = vadd.f32 0.0, %v665
        %v667 = vpop.f32.mrb[0].mxu0
        %668 = vmatprep.mubr.f32.mxu0 0.0
        %669 = vmatmul.mubr.f32.gmra.mrb[0].mxu0 %v298
        %v670 = vpop.f32.mrb[0].mxu0
        %v671 = vadd.f32 0.0, %v670
        %v672 = vpop.f32.mrb[0].mxu0
        %673 = vmatprep.mubr.f32.mxu0 0.0
        %674 = vmatmul.mubr.f32.gmra.mrb[0].mxu0 %v299
        %v675 = vpop.f32.mrb[0].mxu0
        %v676 = vadd.f32 0.0, %v675
        %v677 = vpop.f32.mrb[0].mxu0
        %678 = vmatprep.mubr.f32.mxu0 0.0
        %679 = vmatmul.mubr.f32.gmra.mrb[0].mxu0 %v300
        %v680 = vpop.f32.mrb[0].mxu0
        %v681 = vadd.f32 0.0, %v680
        %v682 = vpop.f32.mrb[0].mxu0
        %683 = vmatprep.mubr.f32.mxu0 0.0
        %684 = vmatmul.mubr.f32.gmra.mrb[0].mxu0 %v301
        %v685 = vpop.f32.mrb[0].mxu0
        %v686 = vadd.f32 0.0, %v685
        %v687 = vpop.f32.mrb[0].mxu0
        %688 = vmatprep.mubr.f32.mxu0 0.0
        %689 = vmatmul.mubr.f32.gmra.mrb[0].mxu0 %v302
        %v690 = vpop.f32.mrb[0].mxu0
        %v691 = vadd.f32 0.0, %v690
        %v692 = vpop.f32.mrb[0].mxu0
        %693 = vmatprep.mubr.f32.mxu0 0.0
        %694 = vmatmul.mubr.f32.gmra.mrb[0].mxu0 %v303
        %v695 = vpop.f32.mrb[0].mxu0
        %v696 = vadd.f32 0.0, %v695
        %v697 = vpop.f32.mrb[0].mxu0
        %698 = vmatprep.mubr.f32.mxu0 0.0
        %699 = vmatmul.mubr.f32.gmra.mrb[0].mxu0 %v304
        %v700 = vpop.f32.mrb[0].mxu0
        %v701 = vadd.f32 0.0, %v700
        %v702 = vpop.f32.mrb[0].mxu0
        %703 = vmatprep.mubr.f32.mxu0 0.0
        %704 = vmatmul.mubr.f32.gmra.mrb[0].mxu0 %v305
        %v705 = vpop.f32.mrb[0].mxu0
        %v706 = vadd.f32 0.0, %v705
        %v707 = vpop.f32.mrb[0].mxu0
        %708 = vmatprep.mubr.f32.mxu0 0.0
        %709 = vmatmul.mubr.f32.gmra.mrb[0].mxu0 %v306
        %v710 = vpop.f32.mrb[0].mxu0
        %v711 = vadd.f32 0.0, %v710
        %v712 = vpop.f32.mrb[0].mxu0
        %713 = vmatprep.mubr.f32.mxu0 0.0
        %714 = vmatmul.mubr.f32.gmra.mrb[0].mxu0 %v307
        %v715 = vpop.f32.mrb[0].mxu0
        %v716 = vadd.f32 0.0, %v715
        %v717 = vpop.f32.mrb[0].mxu0
        %718 = vmatprep.mubr.f32.mxu0 0.0
        %719 = vmatmul.mubr.f32.gmra.mrb[0].mxu0 %v308
        %v720 = vpop.f32.mrb[0].mxu0
        %v721 = vadd.f32 0.0, %v720
        %v722 = vpop.f32.mrb[0].mxu0
        %723 = vmatprep.mubr.f32.mxu0 0.0
        %724 = vmatmul.mubr.f32.gmra.mrb[0].mxu0 %v309
        %v725 = vpop.f32.mrb[0].mxu0
        %v726 = vadd.f32 0.0, %v725
        %v727 = vpop.f32.mrb[0].mxu0
        %728 = vmatprep.mubr.f32.mxu0 0.0
        %729 = vmatmul.mubr.f32.gmra.mrb[0].mxu0 %v310
        %v730 = vpop.f32.mrb[0].mxu0
        %v731 = vadd.f32 0.0, %v730
        %v732 = vpop.f32.mrb[0].mxu0
        %733 = vmatprep.mubr.f32.mxu0 0.0
        %734 = vmatmul.mubr.f32.gmra.mrb[0].mxu0 %v311
        %v735 = vpop.f32.mrb[0].mxu0
        %v736 = vadd.f32 0.0, %v735
        %v737 = vpop.f32.mrb[0].mxu0
        %738 = vmatprep.mubr.f32.mxu0 0.0
        %739 = vmatmul.mubr.f32.gmra.mrb[0].mxu0 %v312
        %v740 = vpop.f32.mrb[0].mxu0
        %v741 = vadd.f32 0.0, %v740
        %v742 = vpop.f32.mrb[0].mxu0
        %743 = vmatprep.mubr.f32.mxu0 0.0
        %744 = vmatmul.mubr.f32.gmra.mrb[0].mxu0 %v313
        %v745 = vpop.f32.mrb[0].mxu0
        %v746 = vadd.f32 0.0, %v745
        %v747 = vpop.f32.mrb[0].mxu0
        %748 = vmatprep.mubr.f32.mxu0 0.0
        %749 = vmatmul.mubr.f32.gmra.mrb[0].mxu0 %v314
        %v750 = vpop.f32.mrb[0].mxu0
        %v751 = vadd.f32 0.0, %v750
        %v752 = vpop.f32.mrb[0].mxu0
        %753 = vmatprep.mubr.f32.mxu0 0.0
        %754 = vmatmul.mubr.f32.gmra.mrb[0].mxu0 %v315
        %v755 = vpop.f32.mrb[0].mxu0
        %v756 = vadd.f32 0.0, %v755
        %v757 = vpop.f32.mrb[0].mxu0
        %758 = vmatprep.mubr.f32.mxu0 0.0
        %759 = vmatmul.mubr.f32.gmra.mrb[0].mxu0 %v316
        %v760 = vpop.f32.mrb[0].mxu0
        %v761 = vadd.f32 0.0, %v760
        %v762 = vpop.f32.mrb[0].mxu0
        %763 = vmatprep.mubr.f32.mxu0 0.0
        %764 = vmatmul.mubr.f32.gmra.mrb[0].mxu0 %v317
        %v765 = vpop.f32.mrb[0].mxu0
        %v766 = vadd.f32 0.0, %v765
        %v767 = vpop.f32.mrb[0].mxu0
        %768 = vmatprep.mubr.f32.mxu0 0.0
        %769 = vmatmul.mubr.f32.gmra.mrb[0].mxu0 %v318
        %v770 = vpop.f32.mrb[0].mxu0
        %v771 = vadd.f32 0.0, %v770
        %v772 = vpop.f32.mrb[0].mxu0
        %773 = vmatprep.mubr.f32.mxu0 0.0
        %774 = vmatmul.mubr.f32.gmra.mrb[0].mxu0 %v319
        %v775 = vpop.f32.mrb[0].mxu0
        %v776 = vadd.f32 0.0, %v775
        %v777 = vpop.f32.mrb[0].mxu0
        %778 = vmatprep.mubr.f32.mxu0 0.0
        %779 = vmatmul.mubr.f32.gmra.mrb[0].mxu0 %v320
        %v780 = vpop.f32.mrb[0].mxu0
        %v781 = vadd.f32 0.0, %v780
        %v782 = vpop.f32.mrb[0].mxu0
        %783 = vmatprep.mubr.f32.mxu0 0.0
        %784 = vmatmul.mubr.f32.gmra.mrb[0].mxu0 %v321
        %v785 = vpop.f32.mrb[0].mxu0
        %v786 = vadd.f32 0.0, %v785
        %v787 = vpop.f32.mrb[0].mxu0
        %788 = vmatprep.mubr.f32.mxu0 0.0
        %789 = vmatmul.mubr.f32.gmra.mrb[0].mxu0 %v322
        %v790 = vpop.f32.mrb[0].mxu0
        %v791 = vadd.f32 0.0, %v790
        %v792 = vpop.f32.mrb[0].mxu0
        %793 = vmatprep.mubr.f32.mxu0 0.0
        %794 = vmatmul.mubr.f32.gmra.mrb[0].mxu0 %v323
        %v795 = vpop.f32.mrb[0].mxu0
        %v796 = vadd.f32 0.0, %v795
        %v797 = vpop.f32.mrb[0].mxu0
        %798 = vmatprep.mubr.f32.mxu0 0.0
        %799 = vmatmul.mubr.f32.gmra.mrb[0].mxu0 %v324
        %v800 = vpop.f32.mrb[0].mxu0
        %v801 = vadd.f32 0.0, %v800
        %v802 = vpop.f32.mrb[0].mxu0
        %803 = vmatprep.mubr.f32.mxu0 0.0
        %804 = vmatmul.mubr.f32.gmra.mrb[0].mxu0 %v325
        %v805 = vpop.f32.mrb[0].mxu0
        %v806 = vadd.f32 0.0, %v805
        %v807 = vpop.f32.mrb[0].mxu0
        %808 = vmatprep.mubr.f32.mxu0 0.0
        %809 = vmatmul.mubr.f32.gmra.mrb[0].mxu0 %v326
        %v810 = vpop.f32.mrb[0].mxu0
        %v811 = vadd.f32 0.0, %v810
        %v812 = vpop.f32.mrb[0].mxu0
        %813 = vdwg.mxu0
        %v815 = vcombine.high %v410, %v410
        %v817 = vunpack.c.l.s4 1966171168
        %v818 = vunpack.c.0.s8 %v817
        %v819 = vlaneseq
        %v820 = vshrl.u32 %v819, 7
        %v821 = vsub.s32 %v818, %v820
        %v822 = vrot.slane %v410, %v821
        %v824 = vunpack.c.l.s4 1966171168
        %v825 = vunpack.c.0.s8 %v824
        %v826 = vlaneseq
        %v827 = vshrl.u32 %v826, 7
        %v828 = vsub.s32 %v825, %v827
        %v829 = vrot.slane %v815, %v828
        %v830 = vcombine.high %v822, %v822
        %v831 = vcombine.high %v829, %v829
        %v833 = vunpack.c.l.s4 1966171168
        %v834 = vunpack.c.0.s8 %v833
        %v835 = vlaneseq
        %v836 = vshrl.u32 %v835, 7
        %v837 = vsub.s32 %v834, %v836
        %v838 = vrot.slane %v822, %v837
        %v840 = vunpack.c.l.s4 1966171168
        %v841 = vunpack.c.0.s8 %v840
        %v842 = vlaneseq
        %v843 = vshrl.u32 %v842, 7
        %v844 = vsub.s32 %v841, %v843
        %v845 = vrot.slane %v829, %v844
        %v847 = vunpack.c.l.s4 1966171168
        %v848 = vunpack.c.0.s8 %v847
        %v849 = vlaneseq
        %v850 = vshrl.u32 %v849, 7
        %v851 = vsub.s32 %v848, %v850
        %v852 = vrot.slane %v830, %v851
        %v854 = vunpack.c.l.s4 1966171168
        %v855 = vunpack.c.0.s8 %v854
        %v856 = vlaneseq
        %v857 = vshrl.u32 %v856, 7
        %v858 = vsub.s32 %v855, %v857
        %v859 = vrot.slane %v831, %v858
        %v860 = vcombine.high %v838, %v838
        %v861 = vcombine.high %v845, %v845
        %v862 = vcombine.high %v852, %v852
        %v863 = vcombine.high %v859, %v859
        %v864 = vlaneseq
        %v865 = vshrl.u32 %v864, 7
        %v866 = vsub.s32 0, %v865
        %v867 = vrot.slane %v838, %v866
        %v868 = vlaneseq
        %v869 = vshrl.u32 %v868, 7
        %v870 = vsub.s32 0, %v869
        %v871 = vrot.slane %v852, %v870
        %v872 = vlaneseq
        %v873 = vshrl.u32 %v872, 7
        %v874 = vsub.s32 0, %v873
        %v875 = vrot.slane %v860, %v874
        %v876 = vlaneseq
        %v877 = vshrl.u32 %v876, 7
        %v878 = vsub.s32 0, %v877
        %v879 = vrot.slane %v862, %v878
        %v880 = vlaneseq
        %v881 = vshrl.u32 %v880, 7
        %v882 = vsub.s32 0, %v881
        %v883 = vrot.slane %v845, %v882
        %v884 = vlaneseq
        %v885 = vshrl.u32 %v884, 7
        %v886 = vsub.s32 0, %v885
        %v887 = vrot.slane %v859, %v886
        %v888 = vlaneseq
        %v889 = vshrl.u32 %v888, 7
        %v890 = vsub.s32 0, %v889
        %v891 = vrot.slane %v861, %v890
        %v892 = vlaneseq
        %v893 = vshrl.u32 %v892, 7
        %v894 = vsub.s32 0, %v893
        %v895 = vrot.slane %v863, %v894
        %v904 = vadd.f32 %v867, %v496
        %v905 = vadd.f32 %v867, %v501
        %v906 = vadd.f32 %v867, %v506
        %v907 = vadd.f32 %v867, %v511
        %v908 = vadd.f32 %v867, %v516
        %v909 = vadd.f32 %v867, %v521
        %v910 = vadd.f32 %v867, %v526
        %v911 = vadd.f32 %v867, %v531
        %v912 = vadd.f32 %v871, %v536
        %v913 = vadd.f32 %v871, %v541
        %v914 = vadd.f32 %v871, %v546
        %v915 = vadd.f32 %v871, %v551
        %v916 = vadd.f32 %v871, %v556
        %v917 = vadd.f32 %v871, %v561
        %v918 = vadd.f32 %v871, %v566
        %v919 = vadd.f32 %v871, %v571
        %v920 = vadd.f32 %v875, %v576
        %v921 = vadd.f32 %v875, %v581
        %v922 = vadd.f32 %v875, %v586
        %v923 = vadd.f32 %v875, %v591
        %v924 = vadd.f32 %v875, %v596
        %v925 = vadd.f32 %v875, %v601
        %v926 = vadd.f32 %v875, %v606
        %v927 = vadd.f32 %v875, %v611
        %v928 = vadd.f32 %v879, %v616
        %v929 = vadd.f32 %v879, %v621
        %v930 = vadd.f32 %v879, %v626
        %v931 = vadd.f32 %v879, %v631
        %v932 = vadd.f32 %v879, %v636
        %v933 = vadd.f32 %v879, %v641
        %v934 = vadd.f32 %v879, %v646
        %v935 = vadd.f32 %v879, %v651
        %v936 = vadd.f32 %v883, %v656
        %v937 = vadd.f32 %v883, %v661
        %v938 = vadd.f32 %v883, %v666
        %v939 = vadd.f32 %v883, %v671
        %v940 = vadd.f32 %v883, %v676
        %v941 = vadd.f32 %v883, %v681
        %v942 = vadd.f32 %v883, %v686
        %v943 = vadd.f32 %v883, %v691
        %v944 = vadd.f32 %v887, %v696
        %v945 = vadd.f32 %v887, %v701
        %v946 = vadd.f32 %v887, %v706
        %v947 = vadd.f32 %v887, %v711
        %v948 = vadd.f32 %v887, %v716
        %v949 = vadd.f32 %v887, %v721
        %v950 = vadd.f32 %v887, %v726
        %v951 = vadd.f32 %v887, %v731
        %v952 = vadd.f32 %v891, %v736
        %v953 = vadd.f32 %v891, %v741
        %v954 = vadd.f32 %v891, %v746
        %v955 = vadd.f32 %v891, %v751
        %v956 = vadd.f32 %v891, %v756
        %v957 = vadd.f32 %v891, %v761
        %v958 = vadd.f32 %v891, %v766
        %v959 = vadd.f32 %v891, %v771
        %v960 = vadd.f32 %v895, %v776
        %v961 = vadd.f32 %v895, %v781
        %v962 = vadd.f32 %v895, %v786
        %v963 = vadd.f32 %v895, %v791
        %v964 = vadd.f32 %v895, %v796
        %v965 = vadd.f32 %v895, %v801
        %v966 = vadd.f32 %v895, %v806
        %v967 = vadd.f32 %v895, %v811
        %v968 = vtanh.pop %v904
        %v969 = vtanh.pop %v905
        %v970 = vtanh.pop %v906
        %v971 = vtanh.pop %v907
        %v972 = vtanh.pop %v908
        %v973 = vtanh.pop %v909
        %v974 = vtanh.pop %v910
        %v975 = vtanh.pop %v911
        %v976 = vtanh.pop %v912
        %v977 = vtanh.pop %v913
        %v978 = vtanh.pop %v914
        %v979 = vtanh.pop %v915
        %v980 = vtanh.pop %v916
        %v981 = vtanh.pop %v917
        %v982 = vtanh.pop %v918
        %v983 = vtanh.pop %v919
        %v984 = vtanh.pop %v920
        %v985 = vtanh.pop %v921
        %v986 = vtanh.pop %v922
        %v987 = vtanh.pop %v923
        %v988 = vtanh.pop %v924
        %v989 = vtanh.pop %v925
        %v990 = vtanh.pop %v926
        %v991 = vtanh.pop %v927
        %v992 = vtanh.pop %v928
        %v993 = vtanh.pop %v929
        %v994 = vtanh.pop %v930
        %v995 = vtanh.pop %v931
        %v996 = vtanh.pop %v932
        %v997 = vtanh.pop %v933
        %v998 = vtanh.pop %v934
        %v999 = vtanh.pop %v935
        %v1000 = vtanh.pop %v936
        %v1001 = vtanh.pop %v937
        %v1002 = vtanh.pop %v938
        %v1003 = vtanh.pop %v939
        %v1004 = vtanh.pop %v940
        %v1005 = vtanh.pop %v941
        %v1006 = vtanh.pop %v942
        %v1007 = vtanh.pop %v943
        %v1008 = vtanh.pop %v944
        %v1009 = vtanh.pop %v945
        %v1010 = vtanh.pop %v946
        %v1011 = vtanh.pop %v947
        %v1012 = vtanh.pop %v948
        %v1013 = vtanh.pop %v949
        %v1014 = vtanh.pop %v950
        %v1015 = vtanh.pop %v951
        %v1016 = vtanh.pop %v952
        %v1017 = vtanh.pop %v953
        %v1018 = vtanh.pop %v954
        %v1019 = vtanh.pop %v955
        %v1020 = vtanh.pop %v956
        %v1021 = vtanh.pop %v957
        %v1022 = vtanh.pop %v958
        %v1023 = vtanh.pop %v959
        %v1024 = vtanh.pop %v960
        %v1025 = vtanh.pop %v961
        %v1026 = vtanh.pop %v962
        %v1027 = vtanh.pop %v963
        %v1028 = vtanh.pop %v964
        %v1029 = vtanh.pop %v965
        %v1030 = vtanh.pop %v966
        %v1031 = vtanh.pop %v967
        %v1032 = vld [vmem:[%s4] sm:$0x1]
        %v1034 = vlaneseq
        %v1035 = vshrl.u32 %v1034, 7
        %v1036 = vsub.s32 0, %v1035
        %v1037 = vrot.slane %v1032, %v1036
        %v1039 = vmul.f32 %v968, %v1037
        %v1040 = vmul.f32 %v969, %v1037
        %v1041 = vmul.f32 %v970, %v1037
        %v1042 = vmul.f32 %v971, %v1037
        %v1043 = vmul.f32 %v972, %v1037
        %v1044 = vmul.f32 %v973, %v1037
        %v1045 = vmul.f32 %v974, %v1037
        %v1046 = vmul.f32 %v975, %v1037
        %v1047 = vmul.f32 %v976, %v1037
        %v1048 = vmul.f32 %v977, %v1037
        %v1049 = vmul.f32 %v978, %v1037
        %v1050 = vmul.f32 %v979, %v1037
        %v1051 = vmul.f32 %v980, %v1037
        %v1052 = vmul.f32 %v981, %v1037
        %v1053 = vmul.f32 %v982, %v1037
        %v1054 = vmul.f32 %v983, %v1037
        %v1055 = vmul.f32 %v984, %v1037
        %v1056 = vmul.f32 %v985, %v1037
        %v1057 = vmul.f32 %v986, %v1037
        %v1058 = vmul.f32 %v987, %v1037
        %v1059 = vmul.f32 %v988, %v1037
        %v1060 = vmul.f32 %v989, %v1037
        %v1061 = vmul.f32 %v990, %v1037
        %v1062 = vmul.f32 %v991, %v1037
        %v1063 = vmul.f32 %v992, %v1037
        %v1064 = vmul.f32 %v993, %v1037
        %v1065 = vmul.f32 %v994, %v1037
        %v1066 = vmul.f32 %v995, %v1037
        %v1067 = vmul.f32 %v996, %v1037
        %v1068 = vmul.f32 %v997, %v1037
        %v1069 = vmul.f32 %v998, %v1037
        %v1070 = vmul.f32 %v999, %v1037
        %v1071 = vmul.f32 %v1000, %v1037
        %v1072 = vmul.f32 %v1001, %v1037
        %v1073 = vmul.f32 %v1002, %v1037
        %v1074 = vmul.f32 %v1003, %v1037
        %v1075 = vmul.f32 %v1004, %v1037
        %v1076 = vmul.f32 %v1005, %v1037
        %v1077 = vmul.f32 %v1006, %v1037
        %v1078 = vmul.f32 %v1007, %v1037
        %v1079 = vmul.f32 %v1008, %v1037
        %v1080 = vmul.f32 %v1009, %v1037
        %v1081 = vmul.f32 %v1010, %v1037
        %v1082 = vmul.f32 %v1011, %v1037
        %v1083 = vmul.f32 %v1012, %v1037
        %v1084 = vmul.f32 %v1013, %v1037
        %v1085 = vmul.f32 %v1014, %v1037
        %v1086 = vmul.f32 %v1015, %v1037
        %v1087 = vmul.f32 %v1016, %v1037
        %v1088 = vmul.f32 %v1017, %v1037
        %v1089 = vmul.f32 %v1018, %v1037
        %v1090 = vmul.f32 %v1019, %v1037
        %v1091 = vmul.f32 %v1020, %v1037
        %v1092 = vmul.f32 %v1021, %v1037
        %v1093 = vmul.f32 %v1022, %v1037
        %v1094 = vmul.f32 %v1023, %v1037
        %v1095 = vmul.f32 %v1024, %v1037
        %v1096 = vmul.f32 %v1025, %v1037
        %v1097 = vmul.f32 %v1026, %v1037
        %v1098 = vmul.f32 %v1027, %v1037
        %v1099 = vmul.f32 %v1028, %v1037
        %v1100 = vmul.f32 %v1029, %v1037
        %v1101 = vmul.f32 %v1030, %v1037
        %v1102 = vmul.f32 %v1031, %v1037
        %1103 = vadd.xlane.f32.xlu0 %v1039
        %v1104 = vpop.xlane.xlu0 %1103
        %1105 = vadd.xlane.f32.xlu0 %v1040
        %v1106 = vpop.xlane.xlu0 %1105
        %1107 = vadd.xlane.f32.xlu0 %v1041
        %v1108 = vpop.xlane.xlu0 %1107
        %1109 = vadd.xlane.f32.xlu0 %v1042
        %v1110 = vpop.xlane.xlu0 %1109
        %1111 = vadd.xlane.f32.xlu0 %v1043
        %v1112 = vpop.xlane.xlu0 %1111
        %1113 = vadd.xlane.f32.xlu0 %v1044
        %v1114 = vpop.xlane.xlu0 %1113
        %1115 = vadd.xlane.f32.xlu0 %v1045
        %v1116 = vpop.xlane.xlu0 %1115
        %1117 = vadd.xlane.f32.xlu0 %v1046
        %v1118 = vpop.xlane.xlu0 %1117
        %1119 = vadd.xlane.f32.xlu0 %v1047
        %v1120 = vpop.xlane.xlu0 %1119
        %1121 = vadd.xlane.f32.xlu0 %v1048
        %v1122 = vpop.xlane.xlu0 %1121
        %1123 = vadd.xlane.f32.xlu0 %v1049
        %v1124 = vpop.xlane.xlu0 %1123
        %1125 = vadd.xlane.f32.xlu0 %v1050
        %v1126 = vpop.xlane.xlu0 %1125
        %1127 = vadd.xlane.f32.xlu0 %v1051
        %v1128 = vpop.xlane.xlu0 %1127
        %1129 = vadd.xlane.f32.xlu0 %v1052
        %v1130 = vpop.xlane.xlu0 %1129
        %1131 = vadd.xlane.f32.xlu0 %v1053
        %v1132 = vpop.xlane.xlu0 %1131
        %1133 = vadd.xlane.f32.xlu0 %v1054
        %v1134 = vpop.xlane.xlu0 %1133
        %1135 = vadd.xlane.f32.xlu0 %v1055
        %v1136 = vpop.xlane.xlu0 %1135
        %1137 = vadd.xlane.f32.xlu0 %v1056
        %v1138 = vpop.xlane.xlu0 %1137
        %1139 = vadd.xlane.f32.xlu0 %v1057
        %v1140 = vpop.xlane.xlu0 %1139
        %1141 = vadd.xlane.f32.xlu0 %v1058
        %v1142 = vpop.xlane.xlu0 %1141
        %1143 = vadd.xlane.f32.xlu0 %v1059
        %v1144 = vpop.xlane.xlu0 %1143
        %1145 = vadd.xlane.f32.xlu0 %v1060
        %v1146 = vpop.xlane.xlu0 %1145
        %1147 = vadd.xlane.f32.xlu0 %v1061
        %v1148 = vpop.xlane.xlu0 %1147
        %1149 = vadd.xlane.f32.xlu0 %v1062
        %v1150 = vpop.xlane.xlu0 %1149
        %1151 = vadd.xlane.f32.xlu0 %v1063
        %v1152 = vpop.xlane.xlu0 %1151
        %1153 = vadd.xlane.f32.xlu0 %v1064
        %v1154 = vpop.xlane.xlu0 %1153
        %1155 = vadd.xlane.f32.xlu0 %v1065
        %v1156 = vpop.xlane.xlu0 %1155
        %1157 = vadd.xlane.f32.xlu0 %v1066
        %v1158 = vpop.xlane.xlu0 %1157
        %1159 = vadd.xlane.f32.xlu0 %v1067
        %v1160 = vpop.xlane.xlu0 %1159
        %1161 = vadd.xlane.f32.xlu0 %v1068
        %v1162 = vpop.xlane.xlu0 %1161
        %1163 = vadd.xlane.f32.xlu0 %v1069
        %v1164 = vpop.xlane.xlu0 %1163
        %1165 = vadd.xlane.f32.xlu0 %v1070
        %v1166 = vpop.xlane.xlu0 %1165
        %1167 = vadd.xlane.f32.xlu0 %v1071
        %v1168 = vpop.xlane.xlu0 %1167
        %1169 = vadd.xlane.f32.xlu0 %v1072
        %v1170 = vpop.xlane.xlu0 %1169
        %1171 = vadd.xlane.f32.xlu0 %v1073
        %v1172 = vpop.xlane.xlu0 %1171
        %1173 = vadd.xlane.f32.xlu0 %v1074
        %v1174 = vpop.xlane.xlu0 %1173
        %1175 = vadd.xlane.f32.xlu0 %v1075
        %v1176 = vpop.xlane.xlu0 %1175
        %1177 = vadd.xlane.f32.xlu0 %v1076
        %v1178 = vpop.xlane.xlu0 %1177
        %1179 = vadd.xlane.f32.xlu0 %v1077
        %v1180 = vpop.xlane.xlu0 %1179
        %1181 = vadd.xlane.f32.xlu0 %v1078
        %v1182 = vpop.xlane.xlu0 %1181
        %1183 = vadd.xlane.f32.xlu0 %v1079
        %v1184 = vpop.xlane.xlu0 %1183
        %1185 = vadd.xlane.f32.xlu0 %v1080
        %v1186 = vpop.xlane.xlu0 %1185
        %1187 = vadd.xlane.f32.xlu0 %v1081
        %v1188 = vpop.xlane.xlu0 %1187
        %1189 = vadd.xlane.f32.xlu0 %v1082
        %v1190 = vpop.xlane.xlu0 %1189
        %1191 = vadd.xlane.f32.xlu0 %v1083
        %v1192 = vpop.xlane.xlu0 %1191
        %1193 = vadd.xlane.f32.xlu0 %v1084
        %v1194 = vpop.xlane.xlu0 %1193
        %1195 = vadd.xlane.f32.xlu0 %v1085
        %v1196 = vpop.xlane.xlu0 %1195
        %1197 = vadd.xlane.f32.xlu0 %v1086
        %v1198 = vpop.xlane.xlu0 %1197
        %1199 = vadd.xlane.f32.xlu0 %v1087
        %v1200 = vpop.xlane.xlu0 %1199
        %1201 = vadd.xlane.f32.xlu0 %v1088
        %v1202 = vpop.xlane.xlu0 %1201
        %1203 = vadd.xlane.f32.xlu0 %v1089
        %v1204 = vpop.xlane.xlu0 %1203
        %1205 = vadd.xlane.f32.xlu0 %v1090
        %v1206 = vpop.xlane.xlu0 %1205
        %1207 = vadd.xlane.f32.xlu0 %v1091
        %v1208 = vpop.xlane.xlu0 %1207
        %1209 = vadd.xlane.f32.xlu0 %v1092
        %v1210 = vpop.xlane.xlu0 %1209
        %1211 = vadd.xlane.f32.xlu0 %v1093
        %v1212 = vpop.xlane.xlu0 %1211
        %1213 = vadd.xlane.f32.xlu0 %v1094
        %v1214 = vpop.xlane.xlu0 %1213
        %1215 = vadd.xlane.f32.xlu0 %v1095
        %v1216 = vpop.xlane.xlu0 %1215
        %1217 = vadd.xlane.f32.xlu0 %v1096
        %v1218 = vpop.xlane.xlu0 %1217
        %1219 = vadd.xlane.f32.xlu0 %v1097
        %v1220 = vpop.xlane.xlu0 %1219
        %1221 = vadd.xlane.f32.xlu0 %v1098
        %v1222 = vpop.xlane.xlu0 %1221
        %1223 = vadd.xlane.f32.xlu0 %v1099
        %v1224 = vpop.xlane.xlu0 %1223
        %1225 = vadd.xlane.f32.xlu0 %v1100
        %v1226 = vpop.xlane.xlu0 %1225
        %1227 = vadd.xlane.f32.xlu0 %v1101
        %v1228 = vpop.xlane.xlu0 %1227
        %1229 = vadd.xlane.f32.xlu0 %v1102
        %v1230 = vpop.xlane.xlu0 %1229
        %v1295 = vlaneseq
        %v1296 = vand.u32 %v1295, 127
        %v1297 = vlaneseq
        %v1298 = vshrl.u32 %v1297, 7
        %v1299 = vsub.s32 %v1296, %v1298
        %v1300 = vrot.slane %v1104, %v1299
        %v1301 = vadd.s32 %v1296, 4294967288
        %v1302 = vlaneseq
        %v1303 = vshrl.u32 %v1302, 7
        %v1304 = vsub.s32 %v1301, %v1303
        %v1305 = vrot.slane %v1106, %v1304
        %vm1306 = vcmask 130112
        %v1307 = vsel %vm1306, %v1305, %v1300
        %v1308 = vadd.s32 %v1296, 4294967280
        %v1309 = vlaneseq
        %v1310 = vshrl.u32 %v1309, 7
        %v1311 = vsub.s32 %v1308, %v1310
        %v1312 = vrot.slane %v1108, %v1311
        %vm1313 = vcmask 195712
        %v1314 = vsel %vm1313, %v1312, %v1307
        %v1315 = vadd.s32 %v1296, 4294967272
        %v1316 = vlaneseq
        %v1317 = vshrl.u32 %v1316, 7
        %v1318 = vsub.s32 %v1315, %v1317
        %v1319 = vrot.slane %v1110, %v1318
        %vm1320 = vcmask 261312
        %v1321 = vsel %vm1320, %v1319, %v1314
        %v1322 = vadd.s32 %v1296, 4294967264
        %v1323 = vlaneseq
        %v1324 = vshrl.u32 %v1323, 7
        %v1325 = vsub.s32 %v1322, %v1324
        %v1326 = vrot.slane %v1112, %v1325
        %vm1327 = vcmask 326912
        %v1328 = vsel %vm1327, %v1326, %v1321
        %v1329 = vadd.s32 %v1296, 4294967256
        %v1330 = vlaneseq
        %v1331 = vshrl.u32 %v1330, 7
        %v1332 = vsub.s32 %v1329, %v1331
        %v1333 = vrot.slane %v1114, %v1332
        %vm1334 = vcmask 392512
        %v1335 = vsel %vm1334, %v1333, %v1328
        %v1336 = vadd.s32 %v1296, 4294967248
        %v1337 = vlaneseq
        %v1338 = vshrl.u32 %v1337, 7
        %v1339 = vsub.s32 %v1336, %v1338
        %v1340 = vrot.slane %v1116, %v1339
        %vm1341 = vcmask 458112
        %v1342 = vsel %vm1341, %v1340, %v1335
        %v1343 = vadd.s32 %v1296, 4294967240
        %v1344 = vlaneseq
        %v1345 = vshrl.u32 %v1344, 7
        %v1346 = vsub.s32 %v1343, %v1345
        %v1347 = vrot.slane %v1118, %v1346
        %vm1348 = vcmask 523712
        %v1349 = vsel %vm1348, %v1347, %v1342
        %v1350 = vlaneseq
        %v1351 = vshrl.u32 %v1350, 7
        %v1352 = vsub.s32 %v1296, %v1351
        %v1353 = vrot.slane %v1120, %v1352
        %v1354 = vlaneseq
        %v1355 = vshrl.u32 %v1354, 7
        %v1356 = vsub.s32 %v1301, %v1355
        %v1357 = vrot.slane %v1122, %v1356
        %v1358 = vsel %vm1306, %v1357, %v1353
        %v1359 = vlaneseq
        %v1360 = vshrl.u32 %v1359, 7
        %v1361 = vsub.s32 %v1308, %v1360
        %v1362 = vrot.slane %v1124, %v1361
        %v1363 = vsel %vm1313, %v1362, %v1358
        %v1364 = vlaneseq
        %v1365 = vshrl.u32 %v1364, 7
        %v1366 = vsub.s32 %v1315, %v1365
        %v1367 = vrot.slane %v1126, %v1366
        %v1368 = vsel %vm1320, %v1367, %v1363
        %v1369 = vlaneseq
        %v1370 = vshrl.u32 %v1369, 7
        %v1371 = vsub.s32 %v1322, %v1370
        %v1372 = vrot.slane %v1128, %v1371
        %v1373 = vsel %vm1327, %v1372, %v1368
        %v1374 = vlaneseq
        %v1375 = vshrl.u32 %v1374, 7
        %v1376 = vsub.s32 %v1329, %v1375
        %v1377 = vrot.slane %v1130, %v1376
        %v1378 = vsel %vm1334, %v1377, %v1373
        %v1379 = vlaneseq
        %v1380 = vshrl.u32 %v1379, 7
        %v1381 = vsub.s32 %v1336, %v1380
        %v1382 = vrot.slane %v1132, %v1381
        %v1383 = vsel %vm1341, %v1382, %v1378
        %v1384 = vlaneseq
        %v1385 = vshrl.u32 %v1384, 7
        %v1386 = vsub.s32 %v1343, %v1385
        %v1387 = vrot.slane %v1134, %v1386
        %v1388 = vsel %vm1348, %v1387, %v1383
        %v1389 = vlaneseq
        %v1390 = vshrl.u32 %v1389, 7
        %v1391 = vsub.s32 %v1296, %v1390
        %v1392 = vrot.slane %v1136, %v1391
        %v1393 = vlaneseq
        %v1394 = vshrl.u32 %v1393, 7
        %v1395 = vsub.s32 %v1301, %v1394
        %v1396 = vrot.slane %v1138, %v1395
        %v1397 = vsel %vm1306, %v1396, %v1392
        %v1398 = vlaneseq
        %v1399 = vshrl.u32 %v1398, 7
        %v1400 = vsub.s32 %v1308, %v1399
        %v1401 = vrot.slane %v1140, %v1400
        %v1402 = vsel %vm1313, %v1401, %v1397
        %v1403 = vlaneseq
        %v1404 = vshrl.u32 %v1403, 7
        %v1405 = vsub.s32 %v1315, %v1404
        %v1406 = vrot.slane %v1142, %v1405
        %v1407 = vsel %vm1320, %v1406, %v1402
        %v1408 = vlaneseq
        %v1409 = vshrl.u32 %v1408, 7
        %v1410 = vsub.s32 %v1322, %v1409
        %v1411 = vrot.slane %v1144, %v1410
        %v1412 = vsel %vm1327, %v1411, %v1407
        %v1413 = vlaneseq
        %v1414 = vshrl.u32 %v1413, 7
        %v1415 = vsub.s32 %v1329, %v1414
        %v1416 = vrot.slane %v1146, %v1415
        %v1417 = vsel %vm1334, %v1416, %v1412
        %v1418 = vlaneseq
        %v1419 = vshrl.u32 %v1418, 7
        %v1420 = vsub.s32 %v1336, %v1419
        %v1421 = vrot.slane %v1148, %v1420
        %v1422 = vsel %vm1341, %v1421, %v1417
        %v1423 = vlaneseq
        %v1424 = vshrl.u32 %v1423, 7
        %v1425 = vsub.s32 %v1343, %v1424
        %v1426 = vrot.slane %v1150, %v1425
        %v1427 = vsel %vm1348, %v1426, %v1422
        %v1428 = vlaneseq
        %v1429 = vshrl.u32 %v1428, 7
        %v1430 = vsub.s32 %v1296, %v1429
        %v1431 = vrot.slane %v1152, %v1430
        %v1432 = vlaneseq
        %v1433 = vshrl.u32 %v1432, 7
        %v1434 = vsub.s32 %v1301, %v1433
        %v1435 = vrot.slane %v1154, %v1434
        %v1436 = vsel %vm1306, %v1435, %v1431
        %v1437 = vlaneseq
        %v1438 = vshrl.u32 %v1437, 7
        %v1439 = vsub.s32 %v1308, %v1438
        %v1440 = vrot.slane %v1156, %v1439
        %v1441 = vsel %vm1313, %v1440, %v1436
        %v1442 = vlaneseq
        %v1443 = vshrl.u32 %v1442, 7
        %v1444 = vsub.s32 %v1315, %v1443
        %v1445 = vrot.slane %v1158, %v1444
        %v1446 = vsel %vm1320, %v1445, %v1441
        %v1447 = vlaneseq
        %v1448 = vshrl.u32 %v1447, 7
        %v1449 = vsub.s32 %v1322, %v1448
        %v1450 = vrot.slane %v1160, %v1449
        %v1451 = vsel %vm1327, %v1450, %v1446
        %v1452 = vlaneseq
        %v1453 = vshrl.u32 %v1452, 7
        %v1454 = vsub.s32 %v1329, %v1453
        %v1455 = vrot.slane %v1162, %v1454
        %v1456 = vsel %vm1334, %v1455, %v1451
        %v1457 = vlaneseq
        %v1458 = vshrl.u32 %v1457, 7
        %v1459 = vsub.s32 %v1336, %v1458
        %v1460 = vrot.slane %v1164, %v1459
        %v1461 = vsel %vm1341, %v1460, %v1456
        %v1462 = vlaneseq
        %v1463 = vshrl.u32 %v1462, 7
        %v1464 = vsub.s32 %v1343, %v1463
        %v1465 = vrot.slane %v1166, %v1464
        %v1466 = vsel %vm1348, %v1465, %v1461
        %v1467 = vlaneseq
        %v1468 = vshrl.u32 %v1467, 7
        %v1469 = vsub.s32 %v1296, %v1468
        %v1470 = vrot.slane %v1168, %v1469
        %v1471 = vlaneseq
        %v1472 = vshrl.u32 %v1471, 7
        %v1473 = vsub.s32 %v1301, %v1472
        %v1474 = vrot.slane %v1170, %v1473
        %v1475 = vsel %vm1306, %v1474, %v1470
        %v1476 = vlaneseq
        %v1477 = vshrl.u32 %v1476, 7
        %v1478 = vsub.s32 %v1308, %v1477
        %v1479 = vrot.slane %v1172, %v1478
        %v1480 = vsel %vm1313, %v1479, %v1475
        %v1481 = vlaneseq
        %v1482 = vshrl.u32 %v1481, 7
        %v1483 = vsub.s32 %v1315, %v1482
        %v1484 = vrot.slane %v1174, %v1483
        %v1485 = vsel %vm1320, %v1484, %v1480
        %v1486 = vlaneseq
        %v1487 = vshrl.u32 %v1486, 7
        %v1488 = vsub.s32 %v1322, %v1487
        %v1489 = vrot.slane %v1176, %v1488
        %v1490 = vsel %vm1327, %v1489, %v1485
        %v1491 = vlaneseq
        %v1492 = vshrl.u32 %v1491, 7
        %v1493 = vsub.s32 %v1329, %v1492
        %v1494 = vrot.slane %v1178, %v1493
        %v1495 = vsel %vm1334, %v1494, %v1490
        %v1496 = vlaneseq
        %v1497 = vshrl.u32 %v1496, 7
        %v1498 = vsub.s32 %v1336, %v1497
        %v1499 = vrot.slane %v1180, %v1498
        %v1500 = vsel %vm1341, %v1499, %v1495
        %v1501 = vlaneseq
        %v1502 = vshrl.u32 %v1501, 7
        %v1503 = vsub.s32 %v1343, %v1502
        %v1504 = vrot.slane %v1182, %v1503
        %v1505 = vsel %vm1348, %v1504, %v1500
        %v1506 = vlaneseq
        %v1507 = vshrl.u32 %v1506, 7
        %v1508 = vsub.s32 %v1296, %v1507
        %v1509 = vrot.slane %v1184, %v1508
        %v1510 = vlaneseq
        %v1511 = vshrl.u32 %v1510, 7
        %v1512 = vsub.s32 %v1301, %v1511
        %v1513 = vrot.slane %v1186, %v1512
        %v1514 = vsel %vm1306, %v1513, %v1509
        %v1515 = vlaneseq
        %v1516 = vshrl.u32 %v1515, 7
        %v1517 = vsub.s32 %v1308, %v1516
        %v1518 = vrot.slane %v1188, %v1517
        %v1519 = vsel %vm1313, %v1518, %v1514
        %v1520 = vlaneseq
        %v1521 = vshrl.u32 %v1520, 7
        %v1522 = vsub.s32 %v1315, %v1521
        %v1523 = vrot.slane %v1190, %v1522
        %v1524 = vsel %vm1320, %v1523, %v1519
        %v1525 = vlaneseq
        %v1526 = vshrl.u32 %v1525, 7
        %v1527 = vsub.s32 %v1322, %v1526
        %v1528 = vrot.slane %v1192, %v1527
        %v1529 = vsel %vm1327, %v1528, %v1524
        %v1530 = vlaneseq
        %v1531 = vshrl.u32 %v1530, 7
        %v1532 = vsub.s32 %v1329, %v1531
        %v1533 = vrot.slane %v1194, %v1532
        %v1534 = vsel %vm1334, %v1533, %v1529
        %v1535 = vlaneseq
        %v1536 = vshrl.u32 %v1535, 7
        %v1537 = vsub.s32 %v1336, %v1536
        %v1538 = vrot.slane %v1196, %v1537
        %v1539 = vsel %vm1341, %v1538, %v1534
        %v1540 = vlaneseq
        %v1541 = vshrl.u32 %v1540, 7
        %v1542 = vsub.s32 %v1343, %v1541
        %v1543 = vrot.slane %v1198, %v1542
        %v1544 = vsel %vm1348, %v1543, %v1539
        %v1545 = vlaneseq
        %v1546 = vshrl.u32 %v1545, 7
        %v1547 = vsub.s32 %v1296, %v1546
        %v1548 = vrot.slane %v1200, %v1547
        %v1549 = vlaneseq
        %v1550 = vshrl.u32 %v1549, 7
        %v1551 = vsub.s32 %v1301, %v1550
        %v1552 = vrot.slane %v1202, %v1551
        %v1553 = vsel %vm1306, %v1552, %v1548
        %v1554 = vlaneseq
        %v1555 = vshrl.u32 %v1554, 7
        %v1556 = vsub.s32 %v1308, %v1555
        %v1557 = vrot.slane %v1204, %v1556
        %v1558 = vsel %vm1313, %v1557, %v1553
        %v1559 = vlaneseq
        %v1560 = vshrl.u32 %v1559, 7
        %v1561 = vsub.s32 %v1315, %v1560
        %v1562 = vrot.slane %v1206, %v1561
        %v1563 = vsel %vm1320, %v1562, %v1558
        %v1564 = vlaneseq
        %v1565 = vshrl.u32 %v1564, 7
        %v1566 = vsub.s32 %v1322, %v1565
        %v1567 = vrot.slane %v1208, %v1566
        %v1568 = vsel %vm1327, %v1567, %v1563
        %v1569 = vlaneseq
        %v1570 = vshrl.u32 %v1569, 7
        %v1571 = vsub.s32 %v1329, %v1570
        %v1572 = vrot.slane %v1210, %v1571
        %v1573 = vsel %vm1334, %v1572, %v1568
        %v1574 = vlaneseq
        %v1575 = vshrl.u32 %v1574, 7
        %v1576 = vsub.s32 %v1336, %v1575
        %v1577 = vrot.slane %v1212, %v1576
        %v1578 = vsel %vm1341, %v1577, %v1573
        %v1579 = vlaneseq
        %v1580 = vshrl.u32 %v1579, 7
        %v1581 = vsub.s32 %v1343, %v1580
        %v1582 = vrot.slane %v1214, %v1581
        %v1583 = vsel %vm1348, %v1582, %v1578
        %v1584 = vlaneseq
        %v1585 = vshrl.u32 %v1584, 7
        %v1586 = vsub.s32 %v1296, %v1585
        %v1587 = vrot.slane %v1216, %v1586
        %v1588 = vlaneseq
        %v1589 = vshrl.u32 %v1588, 7
        %v1590 = vsub.s32 %v1301, %v1589
        %v1591 = vrot.slane %v1218, %v1590
        %v1592 = vsel %vm1306, %v1591, %v1587
        %v1593 = vlaneseq
        %v1594 = vshrl.u32 %v1593, 7
        %v1595 = vsub.s32 %v1308, %v1594
        %v1596 = vrot.slane %v1220, %v1595
        %v1597 = vsel %vm1313, %v1596, %v1592
        %v1598 = vlaneseq
        %v1599 = vshrl.u32 %v1598, 7
        %v1600 = vsub.s32 %v1315, %v1599
        %v1601 = vrot.slane %v1222, %v1600
        %v1602 = vsel %vm1320, %v1601, %v1597
        %v1603 = vlaneseq
        %v1604 = vshrl.u32 %v1603, 7
        %v1605 = vsub.s32 %v1322, %v1604
        %v1606 = vrot.slane %v1224, %v1605
        %v1607 = vsel %vm1327, %v1606, %v1602
        %v1608 = vlaneseq
        %v1609 = vshrl.u32 %v1608, 7
        %v1610 = vsub.s32 %v1329, %v1609
        %v1611 = vrot.slane %v1226, %v1610
        %v1612 = vsel %vm1334, %v1611, %v1607
        %v1613 = vlaneseq
        %v1614 = vshrl.u32 %v1613, 7
        %v1615 = vsub.s32 %v1336, %v1614
        %v1616 = vrot.slane %v1228, %v1615
        %v1617 = vsel %vm1341, %v1616, %v1612
        %v1618 = vlaneseq
        %v1619 = vshrl.u32 %v1618, 7
        %v1620 = vsub.s32 %v1343, %v1619
        %v1621 = vrot.slane %v1230, %v1620
        %v1622 = vsel %vm1348, %v1621, %v1617
        %vm1623 = vcmask 1041409
        %v1624 = vsel %vm1623, %v1388, %v1349
        %vm1625 = vcmask 1042434
        %v1626 = vsel %vm1625, %v1427, %v1624
        %vm1627 = vcmask 1043459
        %v1628 = vsel %vm1627, %v1466, %v1626
        %vm1629 = vcmask 1044484
        %v1630 = vsel %vm1629, %v1505, %v1628
        %vm1631 = vcmask 1045509
        %v1632 = vsel %vm1631, %v1544, %v1630
        %vm1633 = vcmask 1046534
        %v1634 = vsel %vm1633, %v1583, %v1632
        %vm1635 = vcmask 1047559
        %v1636 = vsel %vm1635, %v1622, %v1634
        %vm1638 = vcmask 523264
        %v1639 = vsel %vm1638, %v1636, -inf
        %1640 = vmax.xlane.f32.xlu0 %v1639
        %v1641 = vpop.xlane.xlu0 %1640
        %v1643 = vlaneseq
        %v1644 = vshrl.u32 %v1643, 7
        %v1645 = vsub.s32 0, %v1644
        %v1646 = vrot.slane %v1641, %v1645
        %v1647 = vlaneseq
        %v1648 = vshrl.u32 %v1647, 7
        %v1649 = vsub.s32 1, %v1648
        %v1650 = vrot.slane %v1641, %v1649
        %v1651 = vlaneseq
        %v1652 = vshrl.u32 %v1651, 7
        %v1653 = vsub.s32 2, %v1652
        %v1654 = vrot.slane %v1641, %v1653
        %v1655 = vlaneseq
        %v1656 = vshrl.u32 %v1655, 7
        %v1657 = vsub.s32 3, %v1656
        %v1658 = vrot.slane %v1641, %v1657
        %v1659 = vlaneseq
        %v1660 = vshrl.u32 %v1659, 7
        %v1661 = vsub.s32 4, %v1660
        %v1662 = vrot.slane %v1641, %v1661
        %v1663 = vlaneseq
        %v1664 = vshrl.u32 %v1663, 7
        %v1665 = vsub.s32 5, %v1664
        %v1666 = vrot.slane %v1641, %v1665
        %v1667 = vlaneseq
        %v1668 = vshrl.u32 %v1667, 7
        %v1669 = vsub.s32 6, %v1668
        %v1670 = vrot.slane %v1641, %v1669
        %v1671 = vlaneseq
        %v1672 = vshrl.u32 %v1671, 7
        %v1673 = vsub.s32 7, %v1672
        %v1674 = vrot.slane %v1641, %v1673
        %v1683 = vsub.f32 %v1104, %v1646
        %v1684 = vsub.f32 %v1106, %v1646
        %v1685 = vsub.f32 %v1108, %v1646
        %v1686 = vsub.f32 %v1110, %v1646
        %v1687 = vsub.f32 %v1112, %v1646
        %v1688 = vsub.f32 %v1114, %v1646
        %v1689 = vsub.f32 %v1116, %v1646
        %v1690 = vsub.f32 %v1118, %v1646
        %v1691 = vsub.f32 %v1120, %v1650
        %v1692 = vsub.f32 %v1122, %v1650
        %v1693 = vsub.f32 %v1124, %v1650
        %v1694 = vsub.f32 %v1126, %v1650
        %v1695 = vsub.f32 %v1128, %v1650
        %v1696 = vsub.f32 %v1130, %v1650
        %v1697 = vsub.f32 %v1132, %v1650
        %v1698 = vsub.f32 %v1134, %v1650
        %v1699 = vsub.f32 %v1136, %v1654
        %v1700 = vsub.f32 %v1138, %v1654
        %v1701 = vsub.f32 %v1140, %v1654
        %v1702 = vsub.f32 %v1142, %v1654
        %v1703 = vsub.f32 %v1144, %v1654
        %v1704 = vsub.f32 %v1146, %v1654
        %v1705 = vsub.f32 %v1148, %v1654
        %v1706 = vsub.f32 %v1150, %v1654
        %v1707 = vsub.f32 %v1152, %v1658
        %v1708 = vsub.f32 %v1154, %v1658
        %v1709 = vsub.f32 %v1156, %v1658
        %v1710 = vsub.f32 %v1158, %v1658
        %v1711 = vsub.f32 %v1160, %v1658
        %v1712 = vsub.f32 %v1162, %v1658
        %v1713 = vsub.f32 %v1164, %v1658
        %v1714 = vsub.f32 %v1166, %v1658
        %v1715 = vsub.f32 %v1168, %v1662
        %v1716 = vsub.f32 %v1170, %v1662
        %v1717 = vsub.f32 %v1172, %v1662
        %v1718 = vsub.f32 %v1174, %v1662
        %v1719 = vsub.f32 %v1176, %v1662
        %v1720 = vsub.f32 %v1178, %v1662
        %v1721 = vsub.f32 %v1180, %v1662
        %v1722 = vsub.f32 %v1182, %v1662
        %v1723 = vsub.f32 %v1184, %v1666
        %v1724 = vsub.f32 %v1186, %v1666
        %v1725 = vsub.f32 %v1188, %v1666
        %v1726 = vsub.f32 %v1190, %v1666
        %v1727 = vsub.f32 %v1192, %v1666
        %v1728 = vsub.f32 %v1194, %v1666
        %v1729 = vsub.f32 %v1196, %v1666
        %v1730 = vsub.f32 %v1198, %v1666
        %v1731 = vsub.f32 %v1200, %v1670
        %v1732 = vsub.f32 %v1202, %v1670
        %v1733 = vsub.f32 %v1204, %v1670
        %v1734 = vsub.f32 %v1206, %v1670
        %v1735 = vsub.f32 %v1208, %v1670
        %v1736 = vsub.f32 %v1210, %v1670
        %v1737 = vsub.f32 %v1212, %v1670
        %v1738 = vsub.f32 %v1214, %v1670
        %v1739 = vsub.f32 %v1216, %v1674
        %v1740 = vsub.f32 %v1218, %v1674
        %v1741 = vsub.f32 %v1220, %v1674
        %v1742 = vsub.f32 %v1222, %v1674
        %v1743 = vsub.f32 %v1224, %v1674
        %v1744 = vsub.f32 %v1226, %v1674
        %v1745 = vsub.f32 %v1228, %v1674
        %v1746 = vsub.f32 %v1230, %v1674
        %v1747 = vmul.f32 %v1683, 1.442695
        %v1748 = vpow.pop %v1747
        %v1749 = vmul.f32 %v1684, 1.442695
        %v1750 = vpow.pop %v1749
        %v1751 = vmul.f32 %v1685, 1.442695
        %v1752 = vpow.pop %v1751
        %v1753 = vmul.f32 %v1686, 1.442695
        %v1754 = vpow.pop %v1753
        %v1755 = vmul.f32 %v1687, 1.442695
        %v1756 = vpow.pop %v1755
        %v1757 = vmul.f32 %v1688, 1.442695
        %v1758 = vpow.pop %v1757
        %v1759 = vmul.f32 %v1689, 1.442695
        %v1760 = vpow.pop %v1759
        %v1761 = vmul.f32 %v1690, 1.442695
        %v1762 = vpow.pop %v1761
        %v1763 = vmul.f32 %v1691, 1.442695
        %v1764 = vpow.pop %v1763
        %v1765 = vmul.f32 %v1692, 1.442695
        %v1766 = vpow.pop %v1765
        %v1767 = vmul.f32 %v1693, 1.442695
        %v1768 = vpow.pop %v1767
        %v1769 = vmul.f32 %v1694, 1.442695
        %v1770 = vpow.pop %v1769
        %v1771 = vmul.f32 %v1695, 1.442695
        %v1772 = vpow.pop %v1771
        %v1773 = vmul.f32 %v1696, 1.442695
        %v1774 = vpow.pop %v1773
        %v1775 = vmul.f32 %v1697, 1.442695
        %v1776 = vpow.pop %v1775
        %v1777 = vmul.f32 %v1698, 1.442695
        %v1778 = vpow.pop %v1777
        %v1779 = vmul.f32 %v1699, 1.442695
        %v1780 = vpow.pop %v1779
        %v1781 = vmul.f32 %v1700, 1.442695
        %v1782 = vpow.pop %v1781
        %v1783 = vmul.f32 %v1701, 1.442695
        %v1784 = vpow.pop %v1783
        %v1785 = vmul.f32 %v1702, 1.442695
        %v1786 = vpow.pop %v1785
        %v1787 = vmul.f32 %v1703, 1.442695
        %v1788 = vpow.pop %v1787
        %v1789 = vmul.f32 %v1704, 1.442695
        %v1790 = vpow.pop %v1789
        %v1791 = vmul.f32 %v1705, 1.442695
        %v1792 = vpow.pop %v1791
        %v1793 = vmul.f32 %v1706, 1.442695
        %v1794 = vpow.pop %v1793
        %v1795 = vmul.f32 %v1707, 1.442695
        %v1796 = vpow.pop %v1795
        %v1797 = vmul.f32 %v1708, 1.442695
        %v1798 = vpow.pop %v1797
        %v1799 = vmul.f32 %v1709, 1.442695
        %v1800 = vpow.pop %v1799
        %v1801 = vmul.f32 %v1710, 1.442695
        %v1802 = vpow.pop %v1801
        %v1803 = vmul.f32 %v1711, 1.442695
        %v1804 = vpow.pop %v1803
        %v1805 = vmul.f32 %v1712, 1.442695
        %v1806 = vpow.pop %v1805
        %v1807 = vmul.f32 %v1713, 1.442695
        %v1808 = vpow.pop %v1807
        %v1809 = vmul.f32 %v1714, 1.442695
        %v1810 = vpow.pop %v1809
        %v1811 = vmul.f32 %v1715, 1.442695
        %v1812 = vpow.pop %v1811
        %v1813 = vmul.f32 %v1716, 1.442695
        %v1814 = vpow.pop %v1813
        %v1815 = vmul.f32 %v1717, 1.442695
        %v1816 = vpow.pop %v1815
        %v1817 = vmul.f32 %v1718, 1.442695
        %v1818 = vpow.pop %v1817
        %v1819 = vmul.f32 %v1719, 1.442695
        %v1820 = vpow.pop %v1819
        %v1821 = vmul.f32 %v1720, 1.442695
        %v1822 = vpow.pop %v1821
        %v1823 = vmul.f32 %v1721, 1.442695
        %v1824 = vpow.pop %v1823
        %v1825 = vmul.f32 %v1722, 1.442695
        %v1826 = vpow.pop %v1825
        %v1827 = vmul.f32 %v1723, 1.442695
        %v1828 = vpow.pop %v1827
        %v1829 = vmul.f32 %v1724, 1.442695
        %v1830 = vpow.pop %v1829
        %v1831 = vmul.f32 %v1725, 1.442695
        %v1832 = vpow.pop %v1831
        %v1833 = vmul.f32 %v1726, 1.442695
        %v1834 = vpow.pop %v1833
        %v1835 = vmul.f32 %v1727, 1.442695
        %v1836 = vpow.pop %v1835
        %v1837 = vmul.f32 %v1728, 1.442695
        %v1838 = vpow.pop %v1837
        %v1839 = vmul.f32 %v1729, 1.442695
        %v1840 = vpow.pop %v1839
        %v1841 = vmul.f32 %v1730, 1.442695
        %v1842 = vpow.pop %v1841
        %v1843 = vmul.f32 %v1731, 1.442695
        %v1844 = vpow.pop %v1843
        %v1845 = vmul.f32 %v1732, 1.442695
        %v1846 = vpow.pop %v1845
        %v1847 = vmul.f32 %v1733, 1.442695
        %v1848 = vpow.pop %v1847
        %v1849 = vmul.f32 %v1734, 1.442695
        %v1850 = vpow.pop %v1849
        %v1851 = vmul.f32 %v1735, 1.442695
        %v1852 = vpow.pop %v1851
        %v1853 = vmul.f32 %v1736, 1.442695
        %v1854 = vpow.pop %v1853
        %v1855 = vmul.f32 %v1737, 1.442695
        %v1856 = vpow.pop %v1855
        %v1857 = vmul.f32 %v1738, 1.442695
        %v1858 = vpow.pop %v1857
        %v1859 = vmul.f32 %v1739, 1.442695
        %v1860 = vpow.pop %v1859
        %v1861 = vmul.f32 %v1740, 1.442695
        %v1862 = vpow.pop %v1861
        %v1863 = vmul.f32 %v1741, 1.442695
        %v1864 = vpow.pop %v1863
        %v1865 = vmul.f32 %v1742, 1.442695
        %v1866 = vpow.pop %v1865
        %v1867 = vmul.f32 %v1743, 1.442695
        %v1868 = vpow.pop %v1867
        %v1869 = vmul.f32 %v1744, 1.442695
        %v1870 = vpow.pop %v1869
        %v1871 = vmul.f32 %v1745, 1.442695
        %v1872 = vpow.pop %v1871
        %v1873 = vmul.f32 %v1746, 1.442695
        %v1874 = vpow.pop %v1873
        %1939 = vset.pattern.permute.xlu0 0
        %1940 = vperm.xlu0 %1939, %v1748
        %v1941 = vpop.permute.xlu0 %1940
        %1942 = vset.pattern.permute.xlu0 0
        %1943 = vperm.xlu0 %1942, %v1750
        %v1944 = vpop.permute.xlu0 %1943
        %1945 = vset.pattern.permute.xlu0 0
        %1946 = vperm.xlu0 %1945, %v1752
        %v1947 = vpop.permute.xlu0 %1946
        %1948 = vset.pattern.permute.xlu0 0
        %1949 = vperm.xlu0 %1948, %v1754
        %v1950 = vpop.permute.xlu0 %1949
        %1951 = vset.pattern.permute.xlu0 0
        %1952 = vperm.xlu0 %1951, %v1756
        %v1953 = vpop.permute.xlu0 %1952
        %1954 = vset.pattern.permute.xlu0 0
        %1955 = vperm.xlu0 %1954, %v1758
        %v1956 = vpop.permute.xlu0 %1955
        %1957 = vset.pattern.permute.xlu0 0
        %1958 = vperm.xlu0 %1957, %v1760
        %v1959 = vpop.permute.xlu0 %1958
        %1960 = vset.pattern.permute.xlu0 0
        %1961 = vperm.xlu0 %1960, %v1762
        %v1962 = vpop.permute.xlu0 %1961
        %1963 = vset.pattern.permute.xlu0 0
        %1964 = vperm.xlu0 %1963, %v1764
        %v1965 = vpop.permute.xlu0 %1964
        %1966 = vset.pattern.permute.xlu0 0
        %1967 = vperm.xlu0 %1966, %v1766
        %v1968 = vpop.permute.xlu0 %1967
        %1969 = vset.pattern.permute.xlu0 0
        %1970 = vperm.xlu0 %1969, %v1768
        %v1971 = vpop.permute.xlu0 %1970
        %1972 = vset.pattern.permute.xlu0 0
        %1973 = vperm.xlu0 %1972, %v1770
        %v1974 = vpop.permute.xlu0 %1973
        %1975 = vset.pattern.permute.xlu0 0
        %1976 = vperm.xlu0 %1975, %v1772
        %v1977 = vpop.permute.xlu0 %1976
        %1978 = vset.pattern.permute.xlu0 0
        %1979 = vperm.xlu0 %1978, %v1774
        %v1980 = vpop.permute.xlu0 %1979
        %1981 = vset.pattern.permute.xlu0 0
        %1982 = vperm.xlu0 %1981, %v1776
        %v1983 = vpop.permute.xlu0 %1982
        %1984 = vset.pattern.permute.xlu0 0
        %1985 = vperm.xlu0 %1984, %v1778
        %v1986 = vpop.permute.xlu0 %1985
        %1987 = vset.pattern.permute.xlu0 0
        %1988 = vperm.xlu0 %1987, %v1780
        %v1989 = vpop.permute.xlu0 %1988
        %1990 = vset.pattern.permute.xlu0 0
        %1991 = vperm.xlu0 %1990, %v1782
        %v1992 = vpop.permute.xlu0 %1991
        %1993 = vset.pattern.permute.xlu0 0
        %1994 = vperm.xlu0 %1993, %v1784
        %v1995 = vpop.permute.xlu0 %1994
        %1996 = vset.pattern.permute.xlu0 0
        %1997 = vperm.xlu0 %1996, %v1786
        %v1998 = vpop.permute.xlu0 %1997
        %1999 = vset.pattern.permute.xlu0 0
        %2000 = vperm.xlu0 %1999, %v1788
        %v2001 = vpop.permute.xlu0 %2000
        %2002 = vset.pattern.permute.xlu0 0
        %2003 = vperm.xlu0 %2002, %v1790
        %v2004 = vpop.permute.xlu0 %2003
        %2005 = vset.pattern.permute.xlu0 0
        %2006 = vperm.xlu0 %2005, %v1792
        %v2007 = vpop.permute.xlu0 %2006
        %2008 = vset.pattern.permute.xlu0 0
        %2009 = vperm.xlu0 %2008, %v1794
        %v2010 = vpop.permute.xlu0 %2009
        %2011 = vset.pattern.permute.xlu0 0
        %2012 = vperm.xlu0 %2011, %v1796
        %v2013 = vpop.permute.xlu0 %2012
        %2014 = vset.pattern.permute.xlu0 0
        %2015 = vperm.xlu0 %2014, %v1798
        %v2016 = vpop.permute.xlu0 %2015
        %2017 = vset.pattern.permute.xlu0 0
        %2018 = vperm.xlu0 %2017, %v1800
        %v2019 = vpop.permute.xlu0 %2018
        %2020 = vset.pattern.permute.xlu0 0
        %2021 = vperm.xlu0 %2020, %v1802
        %v2022 = vpop.permute.xlu0 %2021
        %2023 = vset.pattern.permute.xlu0 0
        %2024 = vperm.xlu0 %2023, %v1804
        %v2025 = vpop.permute.xlu0 %2024
        %2026 = vset.pattern.permute.xlu0 0
        %2027 = vperm.xlu0 %2026, %v1806
        %v2028 = vpop.permute.xlu0 %2027
        %2029 = vset.pattern.permute.xlu0 0
        %2030 = vperm.xlu0 %2029, %v1808
        %v2031 = vpop.permute.xlu0 %2030
        %2032 = vset.pattern.permute.xlu0 0
        %2033 = vperm.xlu0 %2032, %v1810
        %v2034 = vpop.permute.xlu0 %2033
        %2035 = vset.pattern.permute.xlu0 0
        %2036 = vperm.xlu0 %2035, %v1812
        %v2037 = vpop.permute.xlu0 %2036
        %2038 = vset.pattern.permute.xlu0 0
        %2039 = vperm.xlu0 %2038, %v1814
        %v2040 = vpop.permute.xlu0 %2039
        %2041 = vset.pattern.permute.xlu0 0
        %2042 = vperm.xlu0 %2041, %v1816
        %v2043 = vpop.permute.xlu0 %2042
        %2044 = vset.pattern.permute.xlu0 0
        %2045 = vperm.xlu0 %2044, %v1818
        %v2046 = vpop.permute.xlu0 %2045
        %2047 = vset.pattern.permute.xlu0 0
        %2048 = vperm.xlu0 %2047, %v1820
        %v2049 = vpop.permute.xlu0 %2048
        %2050 = vset.pattern.permute.xlu0 0
        %2051 = vperm.xlu0 %2050, %v1822
        %v2052 = vpop.permute.xlu0 %2051
        %2053 = vset.pattern.permute.xlu0 0
        %2054 = vperm.xlu0 %2053, %v1824
        %v2055 = vpop.permute.xlu0 %2054
        %2056 = vset.pattern.permute.xlu0 0
        %2057 = vperm.xlu0 %2056, %v1826
        %v2058 = vpop.permute.xlu0 %2057
        %2059 = vset.pattern.permute.xlu0 0
        %2060 = vperm.xlu0 %2059, %v1828
        %v2061 = vpop.permute.xlu0 %2060
        %2062 = vset.pattern.permute.xlu0 0
        %2063 = vperm.xlu0 %2062, %v1830
        %v2064 = vpop.permute.xlu0 %2063
        %2065 = vset.pattern.permute.xlu0 0
        %2066 = vperm.xlu0 %2065, %v1832
        %v2067 = vpop.permute.xlu0 %2066
        %2068 = vset.pattern.permute.xlu0 0
        %2069 = vperm.xlu0 %2068, %v1834
        %v2070 = vpop.permute.xlu0 %2069
        %2071 = vset.pattern.permute.xlu0 0
        %2072 = vperm.xlu0 %2071, %v1836
        %v2073 = vpop.permute.xlu0 %2072
        %2074 = vset.pattern.permute.xlu0 0
        %2075 = vperm.xlu0 %2074, %v1838
        %v2076 = vpop.permute.xlu0 %2075
        %2077 = vset.pattern.permute.xlu0 0
        %2078 = vperm.xlu0 %2077, %v1840
        %v2079 = vpop.permute.xlu0 %2078
        %2080 = vset.pattern.permute.xlu0 0
        %2081 = vperm.xlu0 %2080, %v1842
        %v2082 = vpop.permute.xlu0 %2081
        %2083 = vset.pattern.permute.xlu0 0
        %2084 = vperm.xlu0 %2083, %v1844
        %v2085 = vpop.permute.xlu0 %2084
        %2086 = vset.pattern.permute.xlu0 0
        %2087 = vperm.xlu0 %2086, %v1846
        %v2088 = vpop.permute.xlu0 %2087
        %2089 = vset.pattern.permute.xlu0 0
        %2090 = vperm.xlu0 %2089, %v1848
        %v2091 = vpop.permute.xlu0 %2090
        %2092 = vset.pattern.permute.xlu0 0
        %2093 = vperm.xlu0 %2092, %v1850
        %v2094 = vpop.permute.xlu0 %2093
        %2095 = vset.pattern.permute.xlu0 0
        %2096 = vperm.xlu0 %2095, %v1852
        %v2097 = vpop.permute.xlu0 %2096
        %2098 = vset.pattern.permute.xlu0 0
        %2099 = vperm.xlu0 %2098, %v1854
        %v2100 = vpop.permute.xlu0 %2099
        %2101 = vset.pattern.permute.xlu0 0
        %2102 = vperm.xlu0 %2101, %v1856
        %v2103 = vpop.permute.xlu0 %2102
        %2104 = vset.pattern.permute.xlu0 0
        %2105 = vperm.xlu0 %2104, %v1858
        %v2106 = vpop.permute.xlu0 %2105
        %2107 = vset.pattern.permute.xlu0 0
        %2108 = vperm.xlu0 %2107, %v1860
        %v2109 = vpop.permute.xlu0 %2108
        %2110 = vset.pattern.permute.xlu0 0
        %2111 = vperm.xlu0 %2110, %v1862
        %v2112 = vpop.permute.xlu0 %2111
        %2113 = vset.pattern.permute.xlu0 0
        %2114 = vperm.xlu0 %2113, %v1864
        %v2115 = vpop.permute.xlu0 %2114
        %2116 = vset.pattern.permute.xlu0 0
        %2117 = vperm.xlu0 %2116, %v1866
        %v2118 = vpop.permute.xlu0 %2117
        %2119 = vset.pattern.permute.xlu0 0
        %2120 = vperm.xlu0 %2119, %v1868
        %v2121 = vpop.permute.xlu0 %2120
        %2122 = vset.pattern.permute.xlu0 0
        %2123 = vperm.xlu0 %2122, %v1870
        %v2124 = vpop.permute.xlu0 %2123
        %2125 = vset.pattern.permute.xlu0 0
        %2126 = vperm.xlu0 %2125, %v1872
        %v2127 = vpop.permute.xlu0 %2126
        %2128 = vset.pattern.permute.xlu0 0
        %2129 = vperm.xlu0 %2128, %v1874
        %v2130 = vpop.permute.xlu0 %2129
        %v2131 = vlaneseq
        %v2132 = vshrl.u32 %v2131, 7
        %v2133 = vsub.s32 %v1296, %v2132
        %v2134 = vrot.slane %v1941, %v2133
        %v2135 = vlaneseq
        %v2136 = vshrl.u32 %v2135, 7
        %v2137 = vsub.s32 %v1301, %v2136
        %v2138 = vrot.slane %v1944, %v2137
        %v2139 = vsel %vm1306, %v2138, %v2134
        %v2140 = vlaneseq
        %v2141 = vshrl.u32 %v2140, 7
        %v2142 = vsub.s32 %v1308, %v2141
        %v2143 = vrot.slane %v1947, %v2142
        %v2144 = vsel %vm1313, %v2143, %v2139
        %v2145 = vlaneseq
        %v2146 = vshrl.u32 %v2145, 7
        %v2147 = vsub.s32 %v1315, %v2146
        %v2148 = vrot.slane %v1950, %v2147
        %v2149 = vsel %vm1320, %v2148, %v2144
        %v2150 = vlaneseq
        %v2151 = vshrl.u32 %v2150, 7
        %v2152 = vsub.s32 %v1322, %v2151
        %v2153 = vrot.slane %v1953, %v2152
        %v2154 = vsel %vm1327, %v2153, %v2149
        %v2155 = vlaneseq
        %v2156 = vshrl.u32 %v2155, 7
        %v2157 = vsub.s32 %v1329, %v2156
        %v2158 = vrot.slane %v1956, %v2157
        %v2159 = vsel %vm1334, %v2158, %v2154
        %v2160 = vlaneseq
        %v2161 = vshrl.u32 %v2160, 7
        %v2162 = vsub.s32 %v1336, %v2161
        %v2163 = vrot.slane %v1959, %v2162
        %v2164 = vsel %vm1341, %v2163, %v2159
        %v2165 = vlaneseq
        %v2166 = vshrl.u32 %v2165, 7
        %v2167 = vsub.s32 %v1343, %v2166
        %v2168 = vrot.slane %v1962, %v2167
        %v2169 = vsel %vm1348, %v2168, %v2164
        %v2170 = vlaneseq
        %v2171 = vshrl.u32 %v2170, 7
        %v2172 = vsub.s32 %v1296, %v2171
        %v2173 = vrot.slane %v1965, %v2172
        %v2174 = vlaneseq
        %v2175 = vshrl.u32 %v2174, 7
        %v2176 = vsub.s32 %v1301, %v2175
        %v2177 = vrot.slane %v1968, %v2176
        %v2178 = vsel %vm1306, %v2177, %v2173
        %v2179 = vlaneseq
        %v2180 = vshrl.u32 %v2179, 7
        %v2181 = vsub.s32 %v1308, %v2180
        %v2182 = vrot.slane %v1971, %v2181
        %v2183 = vsel %vm1313, %v2182, %v2178
        %v2184 = vlaneseq
        %v2185 = vshrl.u32 %v2184, 7
        %v2186 = vsub.s32 %v1315, %v2185
        %v2187 = vrot.slane %v1974, %v2186
        %v2188 = vsel %vm1320, %v2187, %v2183
        %v2189 = vlaneseq
        %v2190 = vshrl.u32 %v2189, 7
        %v2191 = vsub.s32 %v1322, %v2190
        %v2192 = vrot.slane %v1977, %v2191
        %v2193 = vsel %vm1327, %v2192, %v2188
        %v2194 = vlaneseq
        %v2195 = vshrl.u32 %v2194, 7
        %v2196 = vsub.s32 %v1329, %v2195
        %v2197 = vrot.slane %v1980, %v2196
        %v2198 = vsel %vm1334, %v2197, %v2193
        %v2199 = vlaneseq
        %v2200 = vshrl.u32 %v2199, 7
        %v2201 = vsub.s32 %v1336, %v2200
        %v2202 = vrot.slane %v1983, %v2201
        %v2203 = vsel %vm1341, %v2202, %v2198
        %v2204 = vlaneseq
        %v2205 = vshrl.u32 %v2204, 7
        %v2206 = vsub.s32 %v1343, %v2205
        %v2207 = vrot.slane %v1986, %v2206
        %v2208 = vsel %vm1348, %v2207, %v2203
        %v2209 = vlaneseq
        %v2210 = vshrl.u32 %v2209, 7
        %v2211 = vsub.s32 %v1296, %v2210
        %v2212 = vrot.slane %v1989, %v2211
        %v2213 = vlaneseq
        %v2214 = vshrl.u32 %v2213, 7
        %v2215 = vsub.s32 %v1301, %v2214
        %v2216 = vrot.slane %v1992, %v2215
        %v2217 = vsel %vm1306, %v2216, %v2212
        %v2218 = vlaneseq
        %v2219 = vshrl.u32 %v2218, 7
        %v2220 = vsub.s32 %v1308, %v2219
        %v2221 = vrot.slane %v1995, %v2220
        %v2222 = vsel %vm1313, %v2221, %v2217
        %v2223 = vlaneseq
        %v2224 = vshrl.u32 %v2223, 7
        %v2225 = vsub.s32 %v1315, %v2224
        %v2226 = vrot.slane %v1998, %v2225
        %v2227 = vsel %vm1320, %v2226, %v2222
        %v2228 = vlaneseq
        %v2229 = vshrl.u32 %v2228, 7
        %v2230 = vsub.s32 %v1322, %v2229
        %v2231 = vrot.slane %v2001, %v2230
        %v2232 = vsel %vm1327, %v2231, %v2227
        %v2233 = vlaneseq
        %v2234 = vshrl.u32 %v2233, 7
        %v2235 = vsub.s32 %v1329, %v2234
        %v2236 = vrot.slane %v2004, %v2235
        %v2237 = vsel %vm1334, %v2236, %v2232
        %v2238 = vlaneseq
        %v2239 = vshrl.u32 %v2238, 7
        %v2240 = vsub.s32 %v1336, %v2239
        %v2241 = vrot.slane %v2007, %v2240
        %v2242 = vsel %vm1341, %v2241, %v2237
        %v2243 = vlaneseq
        %v2244 = vshrl.u32 %v2243, 7
        %v2245 = vsub.s32 %v1343, %v2244
        %v2246 = vrot.slane %v2010, %v2245
        %v2247 = vsel %vm1348, %v2246, %v2242
        %v2248 = vlaneseq
        %v2249 = vshrl.u32 %v2248, 7
        %v2250 = vsub.s32 %v1296, %v2249
        %v2251 = vrot.slane %v2013, %v2250
        %v2252 = vlaneseq
        %v2253 = vshrl.u32 %v2252, 7
        %v2254 = vsub.s32 %v1301, %v2253
        %v2255 = vrot.slane %v2016, %v2254
        %v2256 = vsel %vm1306, %v2255, %v2251
        %v2257 = vlaneseq
        %v2258 = vshrl.u32 %v2257, 7
        %v2259 = vsub.s32 %v1308, %v2258
        %v2260 = vrot.slane %v2019, %v2259
        %v2261 = vsel %vm1313, %v2260, %v2256
        %v2262 = vlaneseq
        %v2263 = vshrl.u32 %v2262, 7
        %v2264 = vsub.s32 %v1315, %v2263
        %v2265 = vrot.slane %v2022, %v2264
        %v2266 = vsel %vm1320, %v2265, %v2261
        %v2267 = vlaneseq
        %v2268 = vshrl.u32 %v2267, 7
        %v2269 = vsub.s32 %v1322, %v2268
        %v2270 = vrot.slane %v2025, %v2269
        %v2271 = vsel %vm1327, %v2270, %v2266
        %v2272 = vlaneseq
        %v2273 = vshrl.u32 %v2272, 7
        %v2274 = vsub.s32 %v1329, %v2273
        %v2275 = vrot.slane %v2028, %v2274
        %v2276 = vsel %vm1334, %v2275, %v2271
        %v2277 = vlaneseq
        %v2278 = vshrl.u32 %v2277, 7
        %v2279 = vsub.s32 %v1336, %v2278
        %v2280 = vrot.slane %v2031, %v2279
        %v2281 = vsel %vm1341, %v2280, %v2276
        %v2282 = vlaneseq
        %v2283 = vshrl.u32 %v2282, 7
        %v2284 = vsub.s32 %v1343, %v2283
        %v2285 = vrot.slane %v2034, %v2284
        %v2286 = vsel %vm1348, %v2285, %v2281
        %v2287 = vlaneseq
        %v2288 = vshrl.u32 %v2287, 7
        %v2289 = vsub.s32 %v1296, %v2288
        %v2290 = vrot.slane %v2037, %v2289
        %v2291 = vlaneseq
        %v2292 = vshrl.u32 %v2291, 7
        %v2293 = vsub.s32 %v1301, %v2292
        %v2294 = vrot.slane %v2040, %v2293
        %v2295 = vsel %vm1306, %v2294, %v2290
        %v2296 = vlaneseq
        %v2297 = vshrl.u32 %v2296, 7
        %v2298 = vsub.s32 %v1308, %v2297
        %v2299 = vrot.slane %v2043, %v2298
        %v2300 = vsel %vm1313, %v2299, %v2295
        %v2301 = vlaneseq
        %v2302 = vshrl.u32 %v2301, 7
        %v2303 = vsub.s32 %v1315, %v2302
        %v2304 = vrot.slane %v2046, %v2303
        %v2305 = vsel %vm1320, %v2304, %v2300
        %v2306 = vlaneseq
        %v2307 = vshrl.u32 %v2306, 7
        %v2308 = vsub.s32 %v1322, %v2307
        %v2309 = vrot.slane %v2049, %v2308
        %v2310 = vsel %vm1327, %v2309, %v2305
        %v2311 = vlaneseq
        %v2312 = vshrl.u32 %v2311, 7
        %v2313 = vsub.s32 %v1329, %v2312
        %v2314 = vrot.slane %v2052, %v2313
        %v2315 = vsel %vm1334, %v2314, %v2310
        %v2316 = vlaneseq
        %v2317 = vshrl.u32 %v2316, 7
        %v2318 = vsub.s32 %v1336, %v2317
        %v2319 = vrot.slane %v2055, %v2318
        %v2320 = vsel %vm1341, %v2319, %v2315
        %v2321 = vlaneseq
        %v2322 = vshrl.u32 %v2321, 7
        %v2323 = vsub.s32 %v1343, %v2322
        %v2324 = vrot.slane %v2058, %v2323
        %v2325 = vsel %vm1348, %v2324, %v2320
        %v2326 = vlaneseq
        %v2327 = vshrl.u32 %v2326, 7
        %v2328 = vsub.s32 %v1296, %v2327
        %v2329 = vrot.slane %v2061, %v2328
        %v2330 = vlaneseq
        %v2331 = vshrl.u32 %v2330, 7
        %v2332 = vsub.s32 %v1301, %v2331
        %v2333 = vrot.slane %v2064, %v2332
        %v2334 = vsel %vm1306, %v2333, %v2329
        %v2335 = vlaneseq
        %v2336 = vshrl.u32 %v2335, 7
        %v2337 = vsub.s32 %v1308, %v2336
        %v2338 = vrot.slane %v2067, %v2337
        %v2339 = vsel %vm1313, %v2338, %v2334
        %v2340 = vlaneseq
        %v2341 = vshrl.u32 %v2340, 7
        %v2342 = vsub.s32 %v1315, %v2341
        %v2343 = vrot.slane %v2070, %v2342
        %v2344 = vsel %vm1320, %v2343, %v2339
        %v2345 = vlaneseq
        %v2346 = vshrl.u32 %v2345, 7
        %v2347 = vsub.s32 %v1322, %v2346
        %v2348 = vrot.slane %v2073, %v2347
        %v2349 = vsel %vm1327, %v2348, %v2344
        %v2350 = vlaneseq
        %v2351 = vshrl.u32 %v2350, 7
        %v2352 = vsub.s32 %v1329, %v2351
        %v2353 = vrot.slane %v2076, %v2352
        %v2354 = vsel %vm1334, %v2353, %v2349
        %v2355 = vlaneseq
        %v2356 = vshrl.u32 %v2355, 7
        %v2357 = vsub.s32 %v1336, %v2356
        %v2358 = vrot.slane %v2079, %v2357
        %v2359 = vsel %vm1341, %v2358, %v2354
        %v2360 = vlaneseq
        %v2361 = vshrl.u32 %v2360, 7
        %v2362 = vsub.s32 %v1343, %v2361
        %v2363 = vrot.slane %v2082, %v2362
        %v2364 = vsel %vm1348, %v2363, %v2359
        %v2365 = vlaneseq
        %v2366 = vshrl.u32 %v2365, 7
        %v2367 = vsub.s32 %v1296, %v2366
        %v2368 = vrot.slane %v2085, %v2367
        %v2369 = vlaneseq
        %v2370 = vshrl.u32 %v2369, 7
        %v2371 = vsub.s32 %v1301, %v2370
        %v2372 = vrot.slane %v2088, %v2371
        %v2373 = vsel %vm1306, %v2372, %v2368
        %v2374 = vlaneseq
        %v2375 = vshrl.u32 %v2374, 7
        %v2376 = vsub.s32 %v1308, %v2375
        %v2377 = vrot.slane %v2091, %v2376
        %v2378 = vsel %vm1313, %v2377, %v2373
        %v2379 = vlaneseq
        %v2380 = vshrl.u32 %v2379, 7
        %v2381 = vsub.s32 %v1315, %v2380
        %v2382 = vrot.slane %v2094, %v2381
        %v2383 = vsel %vm1320, %v2382, %v2378
        %v2384 = vlaneseq
        %v2385 = vshrl.u32 %v2384, 7
        %v2386 = vsub.s32 %v1322, %v2385
        %v2387 = vrot.slane %v2097, %v2386
        %v2388 = vsel %vm1327, %v2387, %v2383
        %v2389 = vlaneseq
        %v2390 = vshrl.u32 %v2389, 7
        %v2391 = vsub.s32 %v1329, %v2390
        %v2392 = vrot.slane %v2100, %v2391
        %v2393 = vsel %vm1334, %v2392, %v2388
        %v2394 = vlaneseq
        %v2395 = vshrl.u32 %v2394, 7
        %v2396 = vsub.s32 %v1336, %v2395
        %v2397 = vrot.slane %v2103, %v2396
        %v2398 = vsel %vm1341, %v2397, %v2393
        %v2399 = vlaneseq
        %v2400 = vshrl.u32 %v2399, 7
        %v2401 = vsub.s32 %v1343, %v2400
        %v2402 = vrot.slane %v2106, %v2401
        %v2403 = vsel %vm1348, %v2402, %v2398
        %v2404 = vlaneseq
        %v2405 = vshrl.u32 %v2404, 7
        %v2406 = vsub.s32 %v1296, %v2405
        %v2407 = vrot.slane %v2109, %v2406
        %v2408 = vlaneseq
        %v2409 = vshrl.u32 %v2408, 7
        %v2410 = vsub.s32 %v1301, %v2409
        %v2411 = vrot.slane %v2112, %v2410
        %v2412 = vsel %vm1306, %v2411, %v2407
        %v2413 = vlaneseq
        %v2414 = vshrl.u32 %v2413, 7
        %v2415 = vsub.s32 %v1308, %v2414
        %v2416 = vrot.slane %v2115, %v2415
        %v2417 = vsel %vm1313, %v2416, %v2412
        %v2418 = vlaneseq
        %v2419 = vshrl.u32 %v2418, 7
        %v2420 = vsub.s32 %v1315, %v2419
        %v2421 = vrot.slane %v2118, %v2420
        %v2422 = vsel %vm1320, %v2421, %v2417
        %v2423 = vlaneseq
        %v2424 = vshrl.u32 %v2423, 7
        %v2425 = vsub.s32 %v1322, %v2424
        %v2426 = vrot.slane %v2121, %v2425
        %v2427 = vsel %vm1327, %v2426, %v2422
        %v2428 = vlaneseq
        %v2429 = vshrl.u32 %v2428, 7
        %v2430 = vsub.s32 %v1329, %v2429
        %v2431 = vrot.slane %v2124, %v2430
        %v2432 = vsel %vm1334, %v2431, %v2427
        %v2433 = vlaneseq
        %v2434 = vshrl.u32 %v2433, 7
        %v2435 = vsub.s32 %v1336, %v2434
        %v2436 = vrot.slane %v2127, %v2435
        %v2437 = vsel %vm1341, %v2436, %v2432
        %v2438 = vlaneseq
        %v2439 = vshrl.u32 %v2438, 7
        %v2440 = vsub.s32 %v1343, %v2439
        %v2441 = vrot.slane %v2130, %v2440
        %v2442 = vsel %vm1348, %v2441, %v2437
        %v2443 = vsel %vm1623, %v2208, %v2169
        %v2444 = vsel %vm1625, %v2247, %v2443
        %v2445 = vsel %vm1627, %v2286, %v2444
        %v2446 = vsel %vm1629, %v2325, %v2445
        %v2447 = vsel %vm1631, %v2364, %v2446
        %v2448 = vsel %vm1633, %v2403, %v2447
        %v2449 = vsel %vm1635, %v2442, %v2448
        %v2451 = vsel %vm1638, %v2449, 0.0
        %2452 = vadd.xlane.f32.xlu0 %v2451
        %v2453 = vpop.xlane.xlu0 %2452
        %v2454 = vrcp.pop %v2453
        %v2456 = vlaneseq
        %v2457 = vshrl.u32 %v2456, 7
        %v2458 = vsub.s32 0, %v2457
        %v2459 = vrot.slane %v2454, %v2458
        %v2460 = vlaneseq
        %v2461 = vshrl.u32 %v2460, 7
        %v2462 = vsub.s32 1, %v2461
        %v2463 = vrot.slane %v2454, %v2462
        %v2464 = vlaneseq
        %v2465 = vshrl.u32 %v2464, 7
        %v2466 = vsub.s32 2, %v2465
        %v2467 = vrot.slane %v2454, %v2466
        %v2468 = vlaneseq
        %v2469 = vshrl.u32 %v2468, 7
        %v2470 = vsub.s32 3, %v2469
        %v2471 = vrot.slane %v2454, %v2470
        %v2472 = vlaneseq
        %v2473 = vshrl.u32 %v2472, 7
        %v2474 = vsub.s32 4, %v2473
        %v2475 = vrot.slane %v2454, %v2474
        %v2476 = vlaneseq
        %v2477 = vshrl.u32 %v2476, 7
        %v2478 = vsub.s32 5, %v2477
        %v2479 = vrot.slane %v2454, %v2478
        %v2480 = vlaneseq
        %v2481 = vshrl.u32 %v2480, 7
        %v2482 = vsub.s32 6, %v2481
        %v2483 = vrot.slane %v2454, %v2482
        %v2484 = vlaneseq
        %v2485 = vshrl.u32 %v2484, 7
        %v2486 = vsub.s32 7, %v2485
        %v2487 = vrot.slane %v2454, %v2486
        %v2496 = vmul.f32 %v1748, %v2459
        %v2497 = vmul.f32 %v1750, %v2459
        %v2498 = vmul.f32 %v1752, %v2459
        %v2499 = vmul.f32 %v1754, %v2459
        %v2500 = vmul.f32 %v1756, %v2459
        %v2501 = vmul.f32 %v1758, %v2459
        %v2502 = vmul.f32 %v1760, %v2459
        %v2503 = vmul.f32 %v1762, %v2459
        %v2504 = vmul.f32 %v1764, %v2463
        %v2505 = vmul.f32 %v1766, %v2463
        %v2506 = vmul.f32 %v1768, %v2463
        %v2507 = vmul.f32 %v1770, %v2463
        %v2508 = vmul.f32 %v1772, %v2463
        %v2509 = vmul.f32 %v1774, %v2463
        %v2510 = vmul.f32 %v1776, %v2463
        %v2511 = vmul.f32 %v1778, %v2463
        %v2512 = vmul.f32 %v1780, %v2467
        %v2513 = vmul.f32 %v1782, %v2467
        %v2514 = vmul.f32 %v1784, %v2467
        %v2515 = vmul.f32 %v1786, %v2467
        %v2516 = vmul.f32 %v1788, %v2467
        %v2517 = vmul.f32 %v1790, %v2467
        %v2518 = vmul.f32 %v1792, %v2467
        %v2519 = vmul.f32 %v1794, %v2467
        %v2520 = vmul.f32 %v1796, %v2471
        %v2521 = vmul.f32 %v1798, %v2471
        %v2522 = vmul.f32 %v1800, %v2471
        %v2523 = vmul.f32 %v1802, %v2471
        %v2524 = vmul.f32 %v1804, %v2471
        %v2525 = vmul.f32 %v1806, %v2471
        %v2526 = vmul.f32 %v1808, %v2471
        %v2527 = vmul.f32 %v1810, %v2471
        %v2528 = vmul.f32 %v1812, %v2475
        %v2529 = vmul.f32 %v1814, %v2475
        %v2530 = vmul.f32 %v1816, %v2475
        %v2531 = vmul.f32 %v1818, %v2475
        %v2532 = vmul.f32 %v1820, %v2475
        %v2533 = vmul.f32 %v1822, %v2475
        %v2534 = vmul.f32 %v1824, %v2475
        %v2535 = vmul.f32 %v1826, %v2475
        %v2536 = vmul.f32 %v1828, %v2479
        %v2537 = vmul.f32 %v1830, %v2479
        %v2538 = vmul.f32 %v1832, %v2479
        %v2539 = vmul.f32 %v1834, %v2479
        %v2540 = vmul.f32 %v1836, %v2479
        %v2541 = vmul.f32 %v1838, %v2479
        %v2542 = vmul.f32 %v1840, %v2479
        %v2543 = vmul.f32 %v1842, %v2479
        %v2544 = vmul.f32 %v1844, %v2483
        %v2545 = vmul.f32 %v1846, %v2483
        %v2546 = vmul.f32 %v1848, %v2483
        %v2547 = vmul.f32 %v1850, %v2483
        %v2548 = vmul.f32 %v1852, %v2483
        %v2549 = vmul.f32 %v1854, %v2483
        %v2550 = vmul.f32 %v1856, %v2483
        %v2551 = vmul.f32 %v1858, %v2483
        %v2552 = vmul.f32 %v1860, %v2487
        %v2553 = vmul.f32 %v1862, %v2487
        %v2554 = vmul.f32 %v1864, %v2487
        %v2555 = vmul.f32 %v1866, %v2487
        %v2556 = vmul.f32 %v1868, %v2487
        %v2557 = vmul.f32 %v1870, %v2487
        %v2558 = vmul.f32 %v1872, %v2487
        %v2559 = vmul.f32 %v1874, %v2487
        %2561 = vset.pattern.permute.xlu0 0
        %2562 = vperm.xlu0 %2561, %v2496
        %v2563 = vpop.permute.xlu0 %2562
        %2566 = vset.pattern.permute.xlu0 0
        %2567 = vperm.xlu0 %2566, %v2497
        %v2568 = vpop.permute.xlu0 %2567
        %2571 = vset.pattern.permute.xlu0 0
        %2572 = vperm.xlu0 %2571, %v2498
        %v2573 = vpop.permute.xlu0 %2572
        %2576 = vset.pattern.permute.xlu0 0
        %2577 = vperm.xlu0 %2576, %v2499
        %v2578 = vpop.permute.xlu0 %2577
        %2581 = vset.pattern.permute.xlu0 0
        %2582 = vperm.xlu0 %2581, %v2500
        %v2583 = vpop.permute.xlu0 %2582
        %2586 = vset.pattern.permute.xlu0 0
        %2587 = vperm.xlu0 %2586, %v2501
        %v2588 = vpop.permute.xlu0 %2587
        %2591 = vset.pattern.permute.xlu0 0
        %2592 = vperm.xlu0 %2591, %v2502
        %v2593 = vpop.permute.xlu0 %2592
        %2596 = vset.pattern.permute.xlu0 0
        %2597 = vperm.xlu0 %2596, %v2503
        %v2598 = vpop.permute.xlu0 %2597
        %2601 = vset.pattern.permute.xlu0 0
        %2602 = vperm.xlu0 %2601, %v2504
        %v2603 = vpop.permute.xlu0 %2602
        %2606 = vset.pattern.permute.xlu0 0
        %2607 = vperm.xlu0 %2606, %v2505
        %v2608 = vpop.permute.xlu0 %2607
        %2611 = vset.pattern.permute.xlu0 0
        %2612 = vperm.xlu0 %2611, %v2506
        %v2613 = vpop.permute.xlu0 %2612
        %2616 = vset.pattern.permute.xlu0 0
        %2617 = vperm.xlu0 %2616, %v2507
        %v2618 = vpop.permute.xlu0 %2617
        %2621 = vset.pattern.permute.xlu0 0
        %2622 = vperm.xlu0 %2621, %v2508
        %v2623 = vpop.permute.xlu0 %2622
        %2626 = vset.pattern.permute.xlu0 0
        %2627 = vperm.xlu0 %2626, %v2509
        %v2628 = vpop.permute.xlu0 %2627
        %2631 = vset.pattern.permute.xlu0 0
        %2632 = vperm.xlu0 %2631, %v2510
        %v2633 = vpop.permute.xlu0 %2632
        %2636 = vset.pattern.permute.xlu0 0
        %2637 = vperm.xlu0 %2636, %v2511
        %v2638 = vpop.permute.xlu0 %2637
        %2641 = vset.pattern.permute.xlu0 0
        %2642 = vperm.xlu0 %2641, %v2512
        %v2643 = vpop.permute.xlu0 %2642
        %2646 = vset.pattern.permute.xlu0 0
        %2647 = vperm.xlu0 %2646, %v2513
        %v2648 = vpop.permute.xlu0 %2647
        %2651 = vset.pattern.permute.xlu0 0
        %2652 = vperm.xlu0 %2651, %v2514
        %v2653 = vpop.permute.xlu0 %2652
        %2656 = vset.pattern.permute.xlu0 0
        %2657 = vperm.xlu0 %2656, %v2515
        %v2658 = vpop.permute.xlu0 %2657
        %2661 = vset.pattern.permute.xlu0 0
        %2662 = vperm.xlu0 %2661, %v2516
        %v2663 = vpop.permute.xlu0 %2662
        %2666 = vset.pattern.permute.xlu0 0
        %2667 = vperm.xlu0 %2666, %v2517
        %v2668 = vpop.permute.xlu0 %2667
        %2671 = vset.pattern.permute.xlu0 0
        %2672 = vperm.xlu0 %2671, %v2518
        %v2673 = vpop.permute.xlu0 %2672
        %2676 = vset.pattern.permute.xlu0 0
        %2677 = vperm.xlu0 %2676, %v2519
        %v2678 = vpop.permute.xlu0 %2677
        %2681 = vset.pattern.permute.xlu0 0
        %2682 = vperm.xlu0 %2681, %v2520
        %v2683 = vpop.permute.xlu0 %2682
        %2686 = vset.pattern.permute.xlu0 0
        %2687 = vperm.xlu0 %2686, %v2521
        %v2688 = vpop.permute.xlu0 %2687
        %2691 = vset.pattern.permute.xlu0 0
        %2692 = vperm.xlu0 %2691, %v2522
        %v2693 = vpop.permute.xlu0 %2692
        %2696 = vset.pattern.permute.xlu0 0
        %2697 = vperm.xlu0 %2696, %v2523
        %v2698 = vpop.permute.xlu0 %2697
        %2701 = vset.pattern.permute.xlu0 0
        %2702 = vperm.xlu0 %2701, %v2524
        %v2703 = vpop.permute.xlu0 %2702
        %2706 = vset.pattern.permute.xlu0 0
        %2707 = vperm.xlu0 %2706, %v2525
        %v2708 = vpop.permute.xlu0 %2707
        %2711 = vset.pattern.permute.xlu0 0
        %2712 = vperm.xlu0 %2711, %v2526
        %v2713 = vpop.permute.xlu0 %2712
        %2716 = vset.pattern.permute.xlu0 0
        %2717 = vperm.xlu0 %2716, %v2527
        %v2718 = vpop.permute.xlu0 %2717
        %2721 = vset.pattern.permute.xlu0 0
        %2722 = vperm.xlu0 %2721, %v2528
        %v2723 = vpop.permute.xlu0 %2722
        %2726 = vset.pattern.permute.xlu0 0
        %2727 = vperm.xlu0 %2726, %v2529
        %v2728 = vpop.permute.xlu0 %2727
        %2731 = vset.pattern.permute.xlu0 0
        %2732 = vperm.xlu0 %2731, %v2530
        %v2733 = vpop.permute.xlu0 %2732
        %2736 = vset.pattern.permute.xlu0 0
        %2737 = vperm.xlu0 %2736, %v2531
        %v2738 = vpop.permute.xlu0 %2737
        %2741 = vset.pattern.permute.xlu0 0
        %2742 = vperm.xlu0 %2741, %v2532
        %v2743 = vpop.permute.xlu0 %2742
        %2746 = vset.pattern.permute.xlu0 0
        %2747 = vperm.xlu0 %2746, %v2533
        %v2748 = vpop.permute.xlu0 %2747
        %2751 = vset.pattern.permute.xlu0 0
        %2752 = vperm.xlu0 %2751, %v2534
        %v2753 = vpop.permute.xlu0 %2752
        %2756 = vset.pattern.permute.xlu0 0
        %2757 = vperm.xlu0 %2756, %v2535
        %v2758 = vpop.permute.xlu0 %2757
        %2761 = vset.pattern.permute.xlu0 0
        %2762 = vperm.xlu0 %2761, %v2536
        %v2763 = vpop.permute.xlu0 %2762
        %2766 = vset.pattern.permute.xlu0 0
        %2767 = vperm.xlu0 %2766, %v2537
        %v2768 = vpop.permute.xlu0 %2767
        %2771 = vset.pattern.permute.xlu0 0
        %2772 = vperm.xlu0 %2771, %v2538
        %v2773 = vpop.permute.xlu0 %2772
        %2776 = vset.pattern.permute.xlu0 0
        %2777 = vperm.xlu0 %2776, %v2539
        %v2778 = vpop.permute.xlu0 %2777
        %2781 = vset.pattern.permute.xlu0 0
        %2782 = vperm.xlu0 %2781, %v2540
        %v2783 = vpop.permute.xlu0 %2782
        %2786 = vset.pattern.permute.xlu0 0
        %2787 = vperm.xlu0 %2786, %v2541
        %v2788 = vpop.permute.xlu0 %2787
        %2791 = vset.pattern.permute.xlu0 0
        %2792 = vperm.xlu0 %2791, %v2542
        %v2793 = vpop.permute.xlu0 %2792
        %2796 = vset.pattern.permute.xlu0 0
        %2797 = vperm.xlu0 %2796, %v2543
        %v2798 = vpop.permute.xlu0 %2797
        %2801 = vset.pattern.permute.xlu0 0
        %2802 = vperm.xlu0 %2801, %v2544
        %v2803 = vpop.permute.xlu0 %2802
        %2806 = vset.pattern.permute.xlu0 0
        %2807 = vperm.xlu0 %2806, %v2545
        %v2808 = vpop.permute.xlu0 %2807
        %2811 = vset.pattern.permute.xlu0 0
        %2812 = vperm.xlu0 %2811, %v2546
        %v2813 = vpop.permute.xlu0 %2812
        %2816 = vset.pattern.permute.xlu0 0
        %2817 = vperm.xlu0 %2816, %v2547
        %v2818 = vpop.permute.xlu0 %2817
        %2821 = vset.pattern.permute.xlu0 0
        %2822 = vperm.xlu0 %2821, %v2548
        %v2823 = vpop.permute.xlu0 %2822
        %2826 = vset.pattern.permute.xlu0 0
        %2827 = vperm.xlu0 %2826, %v2549
        %v2828 = vpop.permute.xlu0 %2827
        %2831 = vset.pattern.permute.xlu0 0
        %2832 = vperm.xlu0 %2831, %v2550
        %v2833 = vpop.permute.xlu0 %2832
        %2836 = vset.pattern.permute.xlu0 0
        %2837 = vperm.xlu0 %2836, %v2551
        %v2838 = vpop.permute.xlu0 %2837
        %2841 = vset.pattern.permute.xlu0 0
        %2842 = vperm.xlu0 %2841, %v2552
        %v2843 = vpop.permute.xlu0 %2842
        %2846 = vset.pattern.permute.xlu0 0
        %2847 = vperm.xlu0 %2846, %v2553
        %v2848 = vpop.permute.xlu0 %2847
        %2851 = vset.pattern.permute.xlu0 0
        %2852 = vperm.xlu0 %2851, %v2554
        %v2853 = vpop.permute.xlu0 %2852
        %2856 = vset.pattern.permute.xlu0 0
        %2857 = vperm.xlu0 %2856, %v2555
        %v2858 = vpop.permute.xlu0 %2857
        %2861 = vset.pattern.permute.xlu0 0
        %2862 = vperm.xlu0 %2861, %v2556
        %v2863 = vpop.permute.xlu0 %2862
        %2866 = vset.pattern.permute.xlu0 0
        %2867 = vperm.xlu0 %2866, %v2557
        %v2868 = vpop.permute.xlu0 %2867
        %2871 = vset.pattern.permute.xlu0 0
        %2872 = vperm.xlu0 %2871, %v2558
        %v2873 = vpop.permute.xlu0 %2872
        %2876 = vset.pattern.permute.xlu0 0
        %2877 = vperm.xlu0 %2876, %v2559
        %v2878 = vpop.permute.xlu0 %2877
        %v2880 = vmul.f32 %v2563, %v263
        %v2881 = vmul.f32 %v2568, %v264
        %v2882 = vmul.f32 %v2573, %v265
        %v2883 = vmul.f32 %v2578, %v266
        %v2884 = vmul.f32 %v2583, %v267
        %v2885 = vmul.f32 %v2588, %v268
        %v2886 = vmul.f32 %v2593, %v269
        %v2887 = vmul.f32 %v2598, %v270
        %v2888 = vmul.f32 %v2603, %v271
        %v2889 = vmul.f32 %v2608, %v272
        %v2890 = vmul.f32 %v2613, %v273
        %v2891 = vmul.f32 %v2618, %v274
        %v2892 = vmul.f32 %v2623, %v275
        %v2893 = vmul.f32 %v2628, %v276
        %v2894 = vmul.f32 %v2633, %v277
        %v2895 = vmul.f32 %v2638, %v278
        %v2896 = vmul.f32 %v2643, %v279
        %v2897 = vmul.f32 %v2648, %v280
        %v2898 = vmul.f32 %v2653, %v281
        %v2899 = vmul.f32 %v2658, %v282
        %v2900 = vmul.f32 %v2663, %v283
        %v2901 = vmul.f32 %v2668, %v284
        %v2902 = vmul.f32 %v2673, %v285
        %v2903 = vmul.f32 %v2678, %v286
        %v2904 = vmul.f32 %v2683, %v287
        %v2905 = vmul.f32 %v2688, %v288
        %v2906 = vmul.f32 %v2693, %v289
        %v2907 = vmul.f32 %v2698, %v290
        %v2908 = vmul.f32 %v2703, %v291
        %v2909 = vmul.f32 %v2708, %v292
        %v2910 = vmul.f32 %v2713, %v293
        %v2911 = vmul.f32 %v2718, %v294
        %v2912 = vmul.f32 %v2723, %v295
        %v2913 = vmul.f32 %v2728, %v296
        %v2914 = vmul.f32 %v2733, %v297
        %v2915 = vmul.f32 %v2738, %v298
        %v2916 = vmul.f32 %v2743, %v299
        %v2917 = vmul.f32 %v2748, %v300
        %v2918 = vmul.f32 %v2753, %v301
        %v2919 = vmul.f32 %v2758, %v302
        %v2920 = vmul.f32 %v2763, %v303
        %v2921 = vmul.f32 %v2768, %v304
        %v2922 = vmul.f32 %v2773, %v305
        %v2923 = vmul.f32 %v2778, %v306
        %v2924 = vmul.f32 %v2783, %v307
        %v2925 = vmul.f32 %v2788, %v308
        %v2926 = vmul.f32 %v2793, %v309
        %v2927 = vmul.f32 %v2798, %v310
        %v2928 = vmul.f32 %v2803, %v311
        %v2929 = vmul.f32 %v2808, %v312
        %v2930 = vmul.f32 %v2813, %v313
        %v2931 = vmul.f32 %v2818, %v314
        %v2932 = vmul.f32 %v2823, %v315
        %v2933 = vmul.f32 %v2828, %v316
        %v2934 = vmul.f32 %v2833, %v317
        %v2935 = vmul.f32 %v2838, %v318
        %v2936 = vmul.f32 %v2843, %v319
        %v2937 = vmul.f32 %v2848, %v320
        %v2938 = vmul.f32 %v2853, %v321
        %v2939 = vmul.f32 %v2858, %v322
        %v2940 = vmul.f32 %v2863, %v323
        %v2941 = vmul.f32 %v2868, %v324
        %v2942 = vmul.f32 %v2873, %v325
        %v2943 = vmul.f32 %v2878, %v326
        %v2944 = vadd.f32 %v2880, %v2881
        %v2945 = vadd.f32 %v2944, %v2882
        %v2946 = vadd.f32 %v2945, %v2883
        %v2947 = vadd.f32 %v2946, %v2884
        %v2948 = vadd.f32 %v2947, %v2885
        %v2949 = vadd.f32 %v2948, %v2886
        %v2950 = vadd.f32 %v2949, %v2887
        %v2951 = vrot.slane %v2950, 4
        %v2952 = vadd.f32 %v2950, %v2951
        %v2953 = vrot.slane %v2952, 2
        %v2954 = vadd.f32 %v2952, %v2953
        %v2955 = vrot.slane %v2954, 1
        %v2956 = vadd.f32 %v2954, %v2955
        %v2957 = vadd.f32 %v2888, %v2889
        %v2958 = vadd.f32 %v2957, %v2890
        %v2959 = vadd.f32 %v2958, %v2891
        %v2960 = vadd.f32 %v2959, %v2892
        %v2961 = vadd.f32 %v2960, %v2893
        %v2962 = vadd.f32 %v2961, %v2894
        %v2963 = vadd.f32 %v2962, %v2895
        %v2964 = vrot.slane %v2963, 4
        %v2965 = vadd.f32 %v2963, %v2964
        %v2966 = vrot.slane %v2965, 2
        %v2967 = vadd.f32 %v2965, %v2966
        %v2968 = vrot.slane %v2967, 1
        %v2969 = vadd.f32 %v2967, %v2968
        %v2970 = vadd.f32 %v2896, %v2897
        %v2971 = vadd.f32 %v2970, %v2898
        %v2972 = vadd.f32 %v2971, %v2899
        %v2973 = vadd.f32 %v2972, %v2900
        %v2974 = vadd.f32 %v2973, %v2901
        %v2975 = vadd.f32 %v2974, %v2902
        %v2976 = vadd.f32 %v2975, %v2903
        %v2977 = vrot.slane %v2976, 4
        %v2978 = vadd.f32 %v2976, %v2977
        %v2979 = vrot.slane %v2978, 2
        %v2980 = vadd.f32 %v2978, %v2979
        %v2981 = vrot.slane %v2980, 1
        %v2982 = vadd.f32 %v2980, %v2981
        %v2983 = vadd.f32 %v2904, %v2905
        %v2984 = vadd.f32 %v2983, %v2906
        %v2985 = vadd.f32 %v2984, %v2907
        %v2986 = vadd.f32 %v2985, %v2908
        %v2987 = vadd.f32 %v2986, %v2909
        %v2988 = vadd.f32 %v2987, %v2910
        %v2989 = vadd.f32 %v2988, %v2911
        %v2990 = vrot.slane %v2989, 4
        %v2991 = vadd.f32 %v2989, %v2990
        %v2992 = vrot.slane %v2991, 2
        %v2993 = vadd.f32 %v2991, %v2992
        %v2994 = vrot.slane %v2993, 1
        %v2995 = vadd.f32 %v2993, %v2994
        %v2996 = vadd.f32 %v2912, %v2913
        %v2997 = vadd.f32 %v2996, %v2914
        %v2998 = vadd.f32 %v2997, %v2915
        %v2999 = vadd.f32 %v2998, %v2916
        %v3000 = vadd.f32 %v2999, %v2917
        %v3001 = vadd.f32 %v3000, %v2918
        %v3002 = vadd.f32 %v3001, %v2919
        %v3003 = vrot.slane %v3002, 4
        %v3004 = vadd.f32 %v3002, %v3003
        %v3005 = vrot.slane %v3004, 2
        %v3006 = vadd.f32 %v3004, %v3005
        %v3007 = vrot.slane %v3006, 1
        %v3008 = vadd.f32 %v3006, %v3007
        %v3009 = vadd.f32 %v2920, %v2921
        %v3010 = vadd.f32 %v3009, %v2922
        %v3011 = vadd.f32 %v3010, %v2923
        %v3012 = vadd.f32 %v3011, %v2924
        %v3013 = vadd.f32 %v3012, %v2925
        %v3014 = vadd.f32 %v3013, %v2926
        %v3015 = vadd.f32 %v3014, %v2927
        %v3016 = vrot.slane %v3015, 4
        %v3017 = vadd.f32 %v3015, %v3016
        %v3018 = vrot.slane %v3017, 2
        %v3019 = vadd.f32 %v3017, %v3018
        %v3020 = vrot.slane %v3019, 1
        %v3021 = vadd.f32 %v3019, %v3020
        %v3022 = vadd.f32 %v2928, %v2929
        %v3023 = vadd.f32 %v3022, %v2930
        %v3024 = vadd.f32 %v3023, %v2931
        %v3025 = vadd.f32 %v3024, %v2932
        %v3026 = vadd.f32 %v3025, %v2933
        %v3027 = vadd.f32 %v3026, %v2934
        %v3028 = vadd.f32 %v3027, %v2935
        %v3029 = vrot.slane %v3028, 4
        %v3030 = vadd.f32 %v3028, %v3029
        %v3031 = vrot.slane %v3030, 2
        %v3032 = vadd.f32 %v3030, %v3031
        %v3033 = vrot.slane %v3032, 1
        %v3034 = vadd.f32 %v3032, %v3033
        %v3035 = vadd.f32 %v2936, %v2937
        %v3036 = vadd.f32 %v3035, %v2938
        %v3037 = vadd.f32 %v3036, %v2939
        %v3038 = vadd.f32 %v3037, %v2940
        %v3039 = vadd.f32 %v3038, %v2941
        %v3040 = vadd.f32 %v3039, %v2942
        %v3041 = vadd.f32 %v3040, %v2943
        %v3042 = vrot.slane %v3041, 4
        %v3043 = vadd.f32 %v3041, %v3042
        %v3044 = vrot.slane %v3043, 2
        %v3045 = vadd.f32 %v3043, %v3044
        %v3046 = vrot.slane %v3045, 1
        %v3047 = vadd.f32 %v3045, %v3046
        %v3056 = vsel %vm1623, %v2969, %v2956
        %v3057 = vsel %vm1625, %v2982, %v3056
        %v3058 = vsel %vm1627, %v2995, %v3057
        %v3059 = vsel %vm1629, %v3008, %v3058
        %v3060 = vsel %vm1631, %v3021, %v3059
        %v3061 = vsel %vm1633, %v3034, %v3060
        %v3062 = vsel %vm1635, %v3047, %v3061
        %3064 = vst [vmem:[%s256] sm:$0xff] %v3062
        %s3065 = sand.u32 %s145, 1
        %s3066 = scalar_lea.sflag [#allocation4], %s3065
        %s3067 = sand.u32 %s145, 1
        %s3068 = smul.addr %s3067, 8
        %s3069 = scalar_lea.vmem [#allocation5], %s3068
        // Predicated region
        $region45: #{attention_pallas.1} parent=39 // pred_check
          %p3070 = pneg %p155
        $region46: #{attention_pallas.1} parent=39 // pred_check_branch
          %3072 = sbr.rel (%p3070) target = $region48
        $region47: #{attention_pallas.1} parent=39 // pred_region
          %s3074 = ssub.s32 128, 128
          %3075 = vsyncadd %s3066, %s3074
          %s3076 = smul.addr %s22, 128
          %s3077 = scalar_lea.hbm %s5, %s3076
          %s3079 = sshll.u32 %s3069, 4
          %s3080 = int_to_ptr.vmem [resolvable:$true] %s3079
          %3082 = dma.vmem_to_hbm [thread:$0]  %s3080, 128, %s3077, %s3066
        $region48: #{attention_pallas.1} parent=39 // pred_fallthru
          _
      $region40: #{attention_pallas.1} parent=5 // pred_fallthru
        _
      %p3083 = scmp.le.s32.totalorder 2, %s17
      // Predicated region
      $region49: #{attention_pallas.1} parent=5 // pred_check
        %p3084 = pneg %p3083
      $region50: #{attention_pallas.1} parent=5 // pred_check_branch
        %3086 = sbr.rel (%p3084) target = $region52
      $region51: #{attention_pallas.1} parent=5 // pred_region
        %s3087 = ssub.s32 %s17, 2
        // Predicated region
        $region53: #{attention_pallas.1} parent=51 // pred_check
          %p3088 = pneg %p161
        $region54: #{attention_pallas.1} parent=51 // pred_check_branch
          %3090 = sbr.rel (%p3088) target = $region56
        $region55: #{attention_pallas.1} parent=51 // pred_region
          %s3091 = sand.u32 %s146, 1
          %s3092 = scalar_lea.sflag [#allocation4], %s3091
          %s3093 = sand.u32 %s146, 1
          %s3094 = smul.addr %s3093, 8
          %s3095 = scalar_lea.vmem [#allocation5], %s3094
          %3096 = dma.done %s3092, 128
        $region56: #{attention_pallas.1} parent=51 // pred_fallthru
          _
      $region52: #{attention_pallas.1} parent=5 // pred_fallthru
        _
    $region6: #{attention_pallas.1} parent=1 // loop_footer
      %s21 = sadd.s32 1, %s17
    $region7: #{attention_pallas.1} parent=1 // loop_footer_branch
      %16 = sbr.rel target = $region3
    $region8: #{attention_pallas.1} parent=1 // loop_exit
      _
    %3097 = vsyncpa [#allocation3], 1
    %s3098 = scalar_lea.sflag [#allocation3], 1
    %3099 = vsyncpa %s3098, 1
    %3100 = vsyncpa [#allocation4], 1
    %s3101 = scalar_lea.sflag [#allocation4], 1
    %3102 = vsyncpa %s3101, 1

</llo_original>
